<compile_context>
chip_gen: v6e
topology: v6e:2x2x1
jax: 0.10.0
libtpu: 0.0.40
codegen_flags: <defaults>
</compile_context>

<pallas_src>
import jax
import jax.numpy as jnp
import numpy as np
from jax.experimental import pallas as pl
from jax.experimental.pallas import tpu as pltpu

LOG_STD_MAX = 2.0
LOG_STD_MIN = -5.0

HIDDEN = 400        # original hidden width
HIDDEN_PAD = 512    # padded hidden width (multiple of 256)


def _round_up(x, m):
    return ((x + m - 1) // m) * m


def _ceil_div(a, b):
    return -(-a // b)


def _num_tensorcores():
    """Best-effort detection of TensorCores per chip (2 on v7x, else 1)."""
    try:
        kind = jax.devices()[0].device_kind.lower()
        if "v7" in kind or "7x" in kind:
            return 2
    except Exception:
        pass
    return 1


def _select_tb(B, tb_cap, min_steps):
    """Pick a batch tile: few grid steps, multiple of 16 (256 when large and
    cheap), little padding waste, never an invalid (non-multiple-of-8) tile."""
    tb_cap = max(16, _round_up(int(tb_cap), 16))
    steps = max(min_steps, _ceil_div(B, tb_cap))
    tb = _round_up(_ceil_div(B, steps), 16)
    # Prefer full 256-row MXU M-passes when that does not blow up padding.
    tb_mxu = _round_up(tb, 256)
    if tb_mxu <= tb_cap and (tb_mxu * steps - B) <= max(128, B // 8):
        tb = tb_mxu
    return tb


def make_actor_kernel(ap):
    def actor_kernel(x_ref, w1_ref, b1_ref, w2_ref, b2_ref, wh_ref, bh_ref,
                     out_ref):
        # Cast the f32 obs tile to bf16 in-kernel (no separate XLA cast pass).
        x = x_ref[...].astype(jnp.bfloat16)

        # fc1 + relu  (bf16 operands, f32 accumulation on the MXU)
        h1 = jnp.dot(x, w1_ref[...],
                     preferred_element_type=jnp.float32) + b1_ref[...]
        h1 = jnp.maximum(h1, 0.0).astype(jnp.bfloat16)

        # fc2 + relu
        h2 = jnp.dot(h1, w2_ref[...],
                     preferred_element_type=jnp.float32) + b2_ref[...]
        h2 = jnp.maximum(h2, 0.0).astype(jnp.bfloat16)

        # fused mean / log_std head: one lane-aligned (HIDDEN_PAD, 2*ap) matmul
        head = jnp.dot(h2, wh_ref[...],
                       preferred_element_type=jnp.float32) + bh_ref[...]

        # lanes [0, ap): mean (identity); lanes [ap, 2*ap): squashed log_std.
        lane = jax.lax.broadcasted_iota(jnp.int32, head.shape, 1)
        squashed = LOG_STD_MIN + 0.5 * (LOG_STD_MAX - LOG_STD_MIN) * (
            jnp.tanh(head) + 1.0)
        out_ref[...] = jnp.where(lane >= ap, squashed, head)

    return actor_kernel


def actor_forward(x, packed_params, act_dim, *, tb=1024):
    """x: (B, obs_dim) f32 -> (mean, log_std), each (B, act_dim) f32."""
    w1, b1, w2, b2, wh, bh = packed_params
    B, obs_dim = x.shape
    obs_pad = w1.shape[0]
    ap = wh.shape[1] // 2

    # On 2-TC chips (v7x) force >= 2 grid steps so "parallel" actually splits.
    min_steps = 2 if (_num_tensorcores() >= 2 and B >= 32) else 1
    TB = _select_tb(B, tb, min_steps)
    Bp = _round_up(B, TB)

    # Single pad op covers both batch rows and obs lanes (no-op if aligned).
    if Bp != B or obs_pad != obs_dim:
        x = jnp.pad(x, ((0, Bp - B), (0, obs_pad - obs_dim)))

    grid = (Bp // TB,)

    def resident(arr):
        # Same block every grid step -> stays resident in VMEM.
        return pl.BlockSpec(arr.shape, lambda i: (0, 0))

    out = pl.pallas_call(
        make_actor_kernel(ap),
        out_shape=jax.ShapeDtypeStruct((Bp, 2 * ap), jnp.float32),
        grid=grid,
        in_specs=[pl.BlockSpec((TB, obs_pad), lambda i: (i, 0)),
                  resident(w1), resident(b1),
                  resident(w2), resident(b2),
                  resident(wh), resident(bh)],
        out_specs=pl.BlockSpec((TB, 2 * ap), lambda i: (i, 0)),
        compiler_params=pltpu.CompilerParams(
            dimension_semantics=("parallel",)),
    )(x, w1, b1, w2, b2, wh, bh)

    mean = out[:B, :act_dim]
    log_std = out[:B, ap:ap + act_dim]
    return mean, log_std


def init_params(key, obs_dim, act_dim, hidden=HIDDEN):
    """PyTorch nn.Linear-style init, weights stored (in_features, out_features)."""
    ks = jax.random.split(key, 8)

    def u(k, shape, fan_in):
        bound = 1.0 / np.sqrt(fan_in)
        return jax.random.uniform(k, shape, jnp.float32, -bound, bound)

    w1 = u(ks[0], (obs_dim, hidden), obs_dim)
    b1 = u(ks[1], (hidden,), obs_dim)
    w2 = u(ks[2], (hidden, hidden), hidden)
    b2 = u(ks[3], (hidden,), hidden)
    wm = u(ks[4], (hidden, act_dim), hidden)
    bm = u(ks[5], (act_dim,), hidden)
    wl = u(ks[6], (hidden, act_dim), hidden)
    bl = u(ks[7], (act_dim,), hidden)
    return (w1, b1, w2, b2, wm, bm, wl, bl)


def pack_params(params, hidden_pad=HIDDEN_PAD):
    """Zero-pad obs->128-multiple and hidden 400->512, fuse mean/logstd heads
    into one lane-aligned slab, cast weights to bf16 (biases stay f32)."""
    w1, b1, w2, b2, wm, bm, wl, bl = params
    obs_dim, hidden = w1.shape
    act_dim = wm.shape[1]
    obs_pad = _round_up(obs_dim, 128)
    ap = 64 if act_dim <= 64 else _round_up(act_dim, 128)   # per-head pad
    H, A2 = hidden_pad, 2 * ap

    w1p = jnp.zeros((obs_pad, H), jnp.float32).at[:obs_dim, :hidden].set(w1)
    b1p = jnp.zeros((1, H), jnp.float32).at[0, :hidden].set(b1)
    w2p = jnp.zeros((H, H), jnp.float32).at[:hidden, :hidden].set(w2)
    b2p = jnp.zeros((1, H), jnp.float32).at[0, :hidden].set(b2)
    whp = (jnp.zeros((H, A2), jnp.float32)
           .at[:hidden, :act_dim].set(wm)
           .at[:hidden, ap:ap + act_dim].set(wl))
    bhp = (jnp.zeros((1, A2), jnp.float32)
           .at[0, :act_dim].set(bm)
           .at[0, ap:ap + act_dim].set(bl))

    return (w1p.astype(jnp.bfloat16), b1p,
            w2p.astype(jnp.bfloat16), b2p,
            whp.astype(jnp.bfloat16), bhp)


def reference_forward(x, params, emulate_bf16=True):
    """Pure-JAX reference matching the kernel's bf16-operand / f32-accum math."""
    w1, b1, w2, b2, wm, bm, wl, bl = params
    if emulate_bf16:
        c = lambda v: v.astype(jnp.bfloat16).astype(jnp.float32)
    else:
        c = lambda v: v
    h = jnp.maximum(c(x) @ c(w1) + b1, 0.0)
    h = jnp.maximum(c(h) @ c(w2) + b2, 0.0)
    hc = c(h)
    mean = hc @ c(wm) + bm
    log_std = jnp.tanh(hc @ c(wl) + bl)
    log_std = LOG_STD_MIN + 0.5 * (LOG_STD_MAX - LOG_STD_MIN) * (log_std + 1.0)
    return mean, log_std


if __name__ == "__main__":
    key = jax.random.PRNGKey(0)
    B, obs_dim, act_dim = 48, 39, 4    # small MetaWorld-like shapes

    k_x, k_p = jax.random.split(key)
    x = jax.random.normal(k_x, (B, obs_dim), jnp.float32)
    params = init_params(k_p, obs_dim, act_dim)
    packed = pack_params(params)

    # tb=16 so the small example still exercises a multi-step batch grid.
    mean, log_std = actor_forward(x, packed, act_dim, tb=16)
    mean = jax.block_until_ready(mean)
    log_std = jax.block_until_ready(log_std)

    ref_mean, ref_log_std = reference_forward(x, params)
    assert mean.shape == (B, act_dim) and log_std.shape == (B, act_dim)
    assert jnp.allclose(mean, ref_mean, atol=2e-2, rtol=2e-2), "mean mismatch"
    assert jnp.allclose(log_std, ref_log_std, atol=2e-2, rtol=2e-2), "log_std mismatch"

    # Exercise the large-tile default path too (single big grid step).
    mean2, log_std2 = actor_forward(x, packed, act_dim)
    jax.block_until_ready(mean2)
    assert jnp.allclose(mean2, ref_mean, atol=2e-2, rtol=2e-2), "mean mismatch (default tb)"
    assert jnp.allclose(log_std2, ref_log_std, atol=2e-2, rtol=2e-2), "log_std mismatch (default tb)"

    print("KERNEL_OK")
</pallas_src>

<mosaic_0001>
module attributes {stable_mosaic.version = 11 : i64} {
  func.func @actor_kernel(%arg0: i32, %arg1: memref<16x128xf32, #tpu.memory_space<vmem>>, %arg2: memref<128x512xbf16, #tpu.memory_space<vmem>>, %arg3: memref<1x512xf32, #tpu.memory_space<vmem>>, %arg4: memref<512x512xbf16, #tpu.memory_space<vmem>>, %arg5: memref<1x512xf32, #tpu.memory_space<vmem>>, %arg6: memref<512x128xbf16, #tpu.memory_space<vmem>>, %arg7: memref<1x128xf32, #tpu.memory_space<vmem>>, %arg8: memref<16x128xf32, #tpu.memory_space<vmem>>) attributes {dimension_semantics = [#tpu.dimension_semantics<parallel>], iteration_bounds = array<i64: 3>, scalar_prefetch = 0 : i64, scratch_operands = 0 : i64, tpu.core_type = #tpu.core_type<tc>, window_params = [{transform_indices = @transform_0, window_bounds = array<i64: 16, 128>}, {pipeline_mode = #tpu.pipeline_mode<synchronous>, transform_indices = @transform_1, window_bounds = array<i64: 128, 512>}, {pipeline_mode = #tpu.pipeline_mode<synchronous>, transform_indices = @transform_2, window_bounds = array<i64: 1, 512>}, {pipeline_mode = #tpu.pipeline_mode<synchronous>, transform_indices = @transform_3, window_bounds = array<i64: 512, 512>}, {pipeline_mode = #tpu.pipeline_mode<synchronous>, transform_indices = @transform_4, window_bounds = array<i64: 1, 512>}, {pipeline_mode = #tpu.pipeline_mode<synchronous>, transform_indices = @transform_5, window_bounds = array<i64: 512, 128>}, {pipeline_mode = #tpu.pipeline_mode<synchronous>, transform_indices = @transform_6, window_bounds = array<i64: 1, 128>}, {transform_indices = @transform_7, window_bounds = array<i64: 16, 128>}]} {
    %c0 = arith.constant 0 : index
    %c0_0 = arith.constant 0 : index
    %0 = vector.load %arg1[%c0, %c0_0] : memref<16x128xf32, #tpu.memory_space<vmem>>, vector<16x128xf32>
    %1 = arith.truncf %0 : vector<16x128xf32> to vector<16x128xbf16>
    %c0_1 = arith.constant 0 : index
    %c0_2 = arith.constant 0 : index
    %2 = vector.load %arg2[%c0_1, %c0_2] : memref<128x512xbf16, #tpu.memory_space<vmem>>, vector<128x512xbf16>
    %cst = arith.constant dense<0.000000e+00> : vector<16x512xf32>
    %3 = tpu.matmul %1, %2, %cst {dimension_numbers = #tpu.dot_dimension_numbers<[1], [0], [0], [1], [0, 0, 1, 1], [], []>} : vector<16x128xbf16>, vector<128x512xbf16>, vector<16x512xf32> -> vector<16x512xf32>
    %c0_3 = arith.constant 0 : index
    %c0_4 = arith.constant 0 : index
    %4 = vector.load %arg3[%c0_3, %c0_4] : memref<1x512xf32, #tpu.memory_space<vmem>>, vector<1x512xf32>
    %5 = vector.broadcast %4 : vector<1x512xf32> to vector<16x512xf32>
    %6 = arith.addf %3, %5 : vector<16x512xf32>
    %cst_5 = arith.constant 0.000000e+00 : f32
    %7 = vector.broadcast %cst_5 : f32 to vector<16x512xf32>
    %8 = arith.maximumf %6, %7 : vector<16x512xf32>
    %9 = arith.truncf %8 : vector<16x512xf32> to vector<16x512xbf16>
    %c0_6 = arith.constant 0 : index
    %c0_7 = arith.constant 0 : index
    %10 = vector.load %arg4[%c0_6, %c0_7] : memref<512x512xbf16, #tpu.memory_space<vmem>>, vector<512x512xbf16>
    %cst_8 = arith.constant dense<0.000000e+00> : vector<16x512xf32>
    %11 = tpu.matmul %9, %10, %cst_8 {dimension_numbers = #tpu.dot_dimension_numbers<[1], [0], [0], [1], [0, 0, 1, 1], [], []>} : vector<16x512xbf16>, vector<512x512xbf16>, vector<16x512xf32> -> vector<16x512xf32>
    %c0_9 = arith.constant 0 : index
    %c0_10 = arith.constant 0 : index
    %12 = vector.load %arg5[%c0_9, %c0_10] : memref<1x512xf32, #tpu.memory_space<vmem>>, vector<1x512xf32>
    %13 = vector.broadcast %12 : vector<1x512xf32> to vector<16x512xf32>
    %14 = arith.addf %11, %13 : vector<16x512xf32>
    %cst_11 = arith.constant 0.000000e+00 : f32
    %15 = vector.broadcast %cst_11 : f32 to vector<16x512xf32>
    %16 = arith.maximumf %14, %15 : vector<16x512xf32>
    %17 = arith.truncf %16 : vector<16x512xf32> to vector<16x512xbf16>
    %c0_12 = arith.constant 0 : index
    %c0_13 = arith.constant 0 : index
    %18 = vector.load %arg6[%c0_12, %c0_13] : memref<512x128xbf16, #tpu.memory_space<vmem>>, vector<512x128xbf16>
    %cst_14 = arith.constant dense<0.000000e+00> : vector<16x128xf32>
    %19 = tpu.matmul %17, %18, %cst_14 {dimension_numbers = #tpu.dot_dimension_numbers<[1], [0], [0], [1], [0, 0, 1, 1], [], []>} : vector<16x512xbf16>, vector<512x128xbf16>, vector<16x128xf32> -> vector<16x128xf32>
    %c0_15 = arith.constant 0 : index
    %c0_16 = arith.constant 0 : index
    %20 = vector.load %arg7[%c0_15, %c0_16] : memref<1x128xf32, #tpu.memory_space<vmem>>, vector<1x128xf32>
    %21 = vector.broadcast %20 : vector<1x128xf32> to vector<16x128xf32>
    %22 = arith.addf %19, %21 : vector<16x128xf32>
    %23 = tpu.iota {dimensions = array<i32: 1>} : vector<16x128xi32>
    %24 = math.tanh %22 : vector<16x128xf32>
    %cst_17 = arith.constant 1.000000e+00 : f32
    %25 = vector.broadcast %cst_17 : f32 to vector<16x128xf32>
    %26 = arith.addf %24, %25 : vector<16x128xf32>
    %cst_18 = arith.constant 3.500000e+00 : f32
    %27 = vector.broadcast %cst_18 : f32 to vector<16x128xf32>
    %28 = arith.mulf %27, %26 : vector<16x128xf32>
    %cst_19 = arith.constant -5.000000e+00 : f32
    %29 = vector.broadcast %cst_19 : f32 to vector<16x128xf32>
    %30 = arith.addf %29, %28 : vector<16x128xf32>
    %c64_i32 = arith.constant 64 : i32
    %31 = vector.broadcast %c64_i32 : i32 to vector<16x128xi32>
    %32 = arith.cmpi sge, %23, %31 : vector<16x128xi32>
    %33 = arith.select %32, %30, %22 : vector<16x128xi1>, vector<16x128xf32>
    %c0_20 = arith.constant 0 : index
    %c0_21 = arith.constant 0 : index
    %34 = vector.load %arg8[%c0_20, %c0_21] : memref<16x128xf32, #tpu.memory_space<vmem>>, vector<16x128xf32>
    tpu.vector_store %arg8[%c0_20, %c0_21], %33 {strides = array<i32>} : memref<16x128xf32, #tpu.memory_space<vmem>>, vector<16x128xf32>,
    return
  }
  func.func @transform_0(%arg0: i32) -> (i32, i32) {
    %c0_i32 = arith.constant 0 : i32
    %c0_i32_0 = arith.constant 0 : i32
    return %arg0, %c0_i32 : i32, i32
  }
  func.func @transform_1(%arg0: i32) -> (i32, i32) {
    %c0_i32 = arith.constant 0 : i32
    %c0_i32_0 = arith.constant 0 : i32
    %c0_i32_1 = arith.constant 0 : i32
    return %c0_i32, %c0_i32_0 : i32, i32
  }
  func.func @transform_2(%arg0: i32) -> (i32, i32) {
    %c0_i32 = arith.constant 0 : i32
    %c0_i32_0 = arith.constant 0 : i32
    %c0_i32_1 = arith.constant 0 : i32
    return %c0_i32, %c0_i32_0 : i32, i32
  }
  func.func @transform_3(%arg0: i32) -> (i32, i32) {
    %c0_i32 = arith.constant 0 : i32
    %c0_i32_0 = arith.constant 0 : i32
    %c0_i32_1 = arith.constant 0 : i32
    return %c0_i32, %c0_i32_0 : i32, i32
  }
  func.func @transform_4(%arg0: i32) -> (i32, i32) {
    %c0_i32 = arith.constant 0 : i32
    %c0_i32_0 = arith.constant 0 : i32
    %c0_i32_1 = arith.constant 0 : i32
    return %c0_i32, %c0_i32_0 : i32, i32
  }
  func.func @transform_5(%arg0: i32) -> (i32, i32) {
    %c0_i32 = arith.constant 0 : i32
    %c0_i32_0 = arith.constant 0 : i32
    %c0_i32_1 = arith.constant 0 : i32
    return %c0_i32, %c0_i32_0 : i32, i32
  }
  func.func @transform_6(%arg0: i32) -> (i32, i32) {
    %c0_i32 = arith.constant 0 : i32
    %c0_i32_0 = arith.constant 0 : i32
    %c0_i32_1 = arith.constant 0 : i32
    return %c0_i32, %c0_i32_0 : i32, i32
  }
  func.func @transform_7(%arg0: i32) -> (i32, i32) {
    %c0_i32 = arith.constant 0 : i32
    %c0_i32_0 = arith.constant 0 : i32
    return %arg0, %c0_i32 : i32, i32
  }
}

</mosaic_0001>

<llo_original>
// kernel: tpu_custom_call.1
$region0: #{tpu_custom_call.1}
  #allocation0 [shape = 'u32[]', space=smem, size = 0x4, offset = 0x4, fixed_abs, tag = 'smem constant byte address 0x4 - core index']
  #allocation1 [shape = 'u32[144,128]{1,0:T(1,128)}', space=vmem, size = 0x12000, scoped, tag = 'internal scratch']
  %s0 = inlined_call_operand.hbm [shape: f32[48,128], index: 0, kind: input, shape index: {}]
  %s1 = inlined_call_operand.hbm [shape: bf16[128,512], index: 1, kind: input, shape index: {}]
  %s2 = inlined_call_operand.hbm [shape: f32[1,512], index: 2, kind: input, shape index: {}]
  %s3 = inlined_call_operand.hbm [shape: bf16[512,512], index: 3, kind: input, shape index: {}]
  %s4 = inlined_call_operand.vmem [shape: f32[1,512], index: 4, kind: input, shape index: {}]
  %s5 = inlined_call_operand.hbm [shape: bf16[512,128], index: 5, kind: input, shape index: {}]
  %s6 = inlined_call_operand.vmem [shape: f32[1,128], index: 6, kind: input, shape index: {}]
  %s7 = inlined_call_operand.hbm [shape: f32[48,128], index: 7, kind: output, shape index: {}]
  %s8 = sld [smem:[#allocation0]]
  $region81: #{tpu_custom_call.1} parent=0
    _
  %s10 = ssub.s32 1, %s8
  %s11 = scalar_select 0, %s10, %s8
  $region1: #{tpu_custom_call.1} parent=0
    #allocation2 [shape = 'u8[16384]{0}', space=vmem, size = 0x4000, scoped, tag = 'input window, operand 0']
    #allocation3 [shape = 's32[2]{0}', space=sflag, size = 0x8, scoped, tag = 'scoped memory for tpu_custom_call.1']
    #allocation4 [shape = 's32[2]{0}', space=sflag, size = 0x8, scoped, tag = 'scoped memory for tpu_custom_call.1']
    #allocation5 [shape = 'u8[131072]{0}', space=vmem, size = 0x20000, scoped, tag = 'input window, operand 1, single buffered']
    #allocation6 [shape = 's32[1]{0}', space=sflag, size = 0x4, scoped, tag = 'scoped memory for tpu_custom_call.1']
    #allocation7 [shape = 'u8[2048]{0}', space=vmem, size = 0x800, scoped, tag = 'input window, operand 2, single buffered']
    #allocation8 [shape = 'u8[524288]{0}', space=vmem, size = 0x80000, scoped, tag = 'input window, operand 3, single buffered']
    #allocation9 [shape = 's32[1]{0}', space=sflag, size = 0x4, scoped, tag = 'scoped memory for tpu_custom_call.1']
    #allocation10 [shape = 'u8[131072]{0}', space=vmem, size = 0x20000, scoped, tag = 'input window, operand 5, single buffered']
    #allocation11 [shape = 'u8[16384]{0}', space=vmem, size = 0x4000, scoped, tag = 'output window, operand 0']
    %12 = vsyncpa [#allocation3], 0
    %s13 = scalar_lea.sflag [#allocation3], 1
    %14 = vsyncpa %s13, 0
    %15 = vsyncpa [#allocation6], 0
    %16 = vsyncpa [#allocation9], 0
    %17 = vsyncpa [#allocation4], 0
    %s18 = scalar_lea.sflag [#allocation4], 1
    %19 = vsyncpa %s18, 0
    loop: start=0, step=1, limit=5
    $region2: #{tpu_custom_call.1} parent=1 // loop_pre_header
      _
    $region3: #{tpu_custom_call.1} parent=1 // loop_header
      %s21 = sphi 0, %s25
      %p22 = scmp.ge.s32.totalorder %s21, 5
      %s31 = sphi 0, %s33
      %s34 = sphi 0, %s31
      %s35 = sphi 0, %s34
      %s51 = sphi 0, %s35
      %s55 = sphi 0, %s55
      %s57 = sphi 0, %s55
      %s58 = sphi 0, %s57
      %s72 = sphi 0, %s58
      %s76 = sphi 0, %s76
      %s78 = sphi 0, %s76
      %s79 = sphi 0, %s78
      %s93 = sphi 0, %s79
      %s97 = sphi 0, %s97
      %s99 = sphi 0, %s97
      %s100 = sphi 0, %s99
      %s114 = sphi 0, %s100
      %s118 = sphi 0, %s118
      %s120 = sphi 0, %s118
      %s121 = sphi 0, %s120
      %s135 = sphi 0, %s121
      %s139 = sphi 0, %s139
      %s141 = sphi 0, %s139
      %s142 = sphi 0, %s141
      %s156 = sphi 0, %s142
      %s160 = sphi 0, %s160
      %s162 = sphi 0, %s160
      %s163 = sphi 0, %s162
      %s177 = sphi 0, %s163
      %s183 = sphi 0, %s185
      %s186 = sphi 0, %s183
      %s187 = sphi 0, %s186
      %s203 = sphi 0, %s187
    $region4: #{tpu_custom_call.1} parent=1 // loop_header_branch
      %24 = sbr.rel (%p22) target = $region8
    $region5: #{tpu_custom_call.1} parent=1 // loop_body
      %s26 = ssub.s32 %s21, 1
      %s27 = ssub.s32 %s21, 2
      %s28 = sadd.s32 %s21, 1
      %s29 = ssub.s32 %s21, %s28
      %p30 = scmp.eq.s32.totalorder %s29, 0
      %s32 = sadd.s32 %s31, 1
      %s33 = scalar_select %p30, %s31, %s32
      %p36 = pneg %p30
      %p37 = scmp.eq.s32.totalorder %s21, 2
      %p38 = por %p36, %p37
      %p39 = scmp.ne.s32.totalorder %s31, %s34
      %p40 = scmp.eq.s32.totalorder %s21, 0
      %p41 = por %p39, %p40
      %p42 = scmp.ne.s32.totalorder %s31, %s34
      %p43 = scmp.eq.s32.totalorder %s26, 2
      %p44 = por %p42, %p43
      %p45 = scmp.ne.s32.totalorder %s34, %s35
      %p46 = scmp.eq.s32.totalorder %s26, 0
      %p47 = por %p45, %p46
      %p48 = scmp.ne.s32.totalorder %s34, %s35
      %p49 = scmp.eq.s32.totalorder %s27, 2
      %p50 = por %p48, %p49
      %p52 = scmp.ne.s32.totalorder %s35, %s51
      %p53 = scmp.eq.s32.totalorder %s27, 0
      %p54 = por %p52, %p53
      %s56 = sadd.s32 %s55, 1
      %p59 = scmp.eq.s32.totalorder %s21, 2
      %p60 = scmp.ne.s32.totalorder %s55, %s57
      %p61 = scmp.eq.s32.totalorder %s21, 0
      %p62 = por %p60, %p61
      %p63 = scmp.ne.s32.totalorder %s55, %s57
      %p64 = scmp.eq.s32.totalorder %s26, 2
      %p65 = por %p63, %p64
      %p66 = scmp.ne.s32.totalorder %s57, %s58
      %p67 = scmp.eq.s32.totalorder %s26, 0
      %p68 = por %p66, %p67
      %p69 = scmp.ne.s32.totalorder %s57, %s58
      %p70 = scmp.eq.s32.totalorder %s27, 2
      %p71 = por %p69, %p70
      %p73 = scmp.ne.s32.totalorder %s58, %s72
      %p74 = scmp.eq.s32.totalorder %s27, 0
      %p75 = por %p73, %p74
      %s77 = sadd.s32 %s76, 1
      %p80 = scmp.eq.s32.totalorder %s21, 2
      %p81 = scmp.ne.s32.totalorder %s76, %s78
      %p82 = scmp.eq.s32.totalorder %s21, 0
      %p83 = por %p81, %p82
      %p84 = scmp.ne.s32.totalorder %s76, %s78
      %p85 = scmp.eq.s32.totalorder %s26, 2
      %p86 = por %p84, %p85
      %p87 = scmp.ne.s32.totalorder %s78, %s79
      %p88 = scmp.eq.s32.totalorder %s26, 0
      %p89 = por %p87, %p88
      %p90 = scmp.ne.s32.totalorder %s78, %s79
      %p91 = scmp.eq.s32.totalorder %s27, 2
      %p92 = por %p90, %p91
      %p94 = scmp.ne.s32.totalorder %s79, %s93
      %p95 = scmp.eq.s32.totalorder %s27, 0
      %p96 = por %p94, %p95
      %s98 = sadd.s32 %s97, 1
      %p101 = scmp.eq.s32.totalorder %s21, 2
      %p102 = scmp.ne.s32.totalorder %s97, %s99
      %p103 = scmp.eq.s32.totalorder %s21, 0
      %p104 = por %p102, %p103
      %p105 = scmp.ne.s32.totalorder %s97, %s99
      %p106 = scmp.eq.s32.totalorder %s26, 2
      %p107 = por %p105, %p106
      %p108 = scmp.ne.s32.totalorder %s99, %s100
      %p109 = scmp.eq.s32.totalorder %s26, 0
      %p110 = por %p108, %p109
      %p111 = scmp.ne.s32.totalorder %s99, %s100
      %p112 = scmp.eq.s32.totalorder %s27, 2
      %p113 = por %p111, %p112
      %p115 = scmp.ne.s32.totalorder %s100, %s114
      %p116 = scmp.eq.s32.totalorder %s27, 0
      %p117 = por %p115, %p116
      %s119 = sadd.s32 %s118, 1
      %p122 = scmp.eq.s32.totalorder %s21, 2
      %p123 = scmp.ne.s32.totalorder %s118, %s120
      %p124 = scmp.eq.s32.totalorder %s21, 0
      %p125 = por %p123, %p124
      %p126 = scmp.ne.s32.totalorder %s118, %s120
      %p127 = scmp.eq.s32.totalorder %s26, 2
      %p128 = por %p126, %p127
      %p129 = scmp.ne.s32.totalorder %s120, %s121
      %p130 = scmp.eq.s32.totalorder %s26, 0
      %p131 = por %p129, %p130
      %p132 = scmp.ne.s32.totalorder %s120, %s121
      %p133 = scmp.eq.s32.totalorder %s27, 2
      %p134 = por %p132, %p133
      %p136 = scmp.ne.s32.totalorder %s121, %s135
      %p137 = scmp.eq.s32.totalorder %s27, 0
      %p138 = por %p136, %p137
      %s140 = sadd.s32 %s139, 1
      %p143 = scmp.eq.s32.totalorder %s21, 2
      %p144 = scmp.ne.s32.totalorder %s139, %s141
      %p145 = scmp.eq.s32.totalorder %s21, 0
      %p146 = por %p144, %p145
      %p147 = scmp.ne.s32.totalorder %s139, %s141
      %p148 = scmp.eq.s32.totalorder %s26, 2
      %p149 = por %p147, %p148
      %p150 = scmp.ne.s32.totalorder %s141, %s142
      %p151 = scmp.eq.s32.totalorder %s26, 0
      %p152 = por %p150, %p151
      %p153 = scmp.ne.s32.totalorder %s141, %s142
      %p154 = scmp.eq.s32.totalorder %s27, 2
      %p155 = por %p153, %p154
      %p157 = scmp.ne.s32.totalorder %s142, %s156
      %p158 = scmp.eq.s32.totalorder %s27, 0
      %p159 = por %p157, %p158
      %s161 = sadd.s32 %s160, 1
      %p164 = scmp.eq.s32.totalorder %s21, 2
      %p165 = scmp.ne.s32.totalorder %s160, %s162
      %p166 = scmp.eq.s32.totalorder %s21, 0
      %p167 = por %p165, %p166
      %p168 = scmp.ne.s32.totalorder %s160, %s162
      %p169 = scmp.eq.s32.totalorder %s26, 2
      %p170 = por %p168, %p169
      %p171 = scmp.ne.s32.totalorder %s162, %s163
      %p172 = scmp.eq.s32.totalorder %s26, 0
      %p173 = por %p171, %p172
      %p174 = scmp.ne.s32.totalorder %s162, %s163
      %p175 = scmp.eq.s32.totalorder %s27, 2
      %p176 = por %p174, %p175
      %p178 = scmp.ne.s32.totalorder %s163, %s177
      %p179 = scmp.eq.s32.totalorder %s27, 0
      %p180 = por %p178, %p179
      %s181 = ssub.s32 %s21, %s28
      %p182 = scmp.eq.s32.totalorder %s181, 0
      %s184 = sadd.s32 %s183, 1
      %s185 = scalar_select %p182, %s183, %s184
      %p188 = pneg %p182
      %p189 = scmp.eq.s32.totalorder %s21, 2
      %p190 = por %p188, %p189
      %p191 = scmp.ne.s32.totalorder %s183, %s186
      %p192 = scmp.eq.s32.totalorder %s21, 0
      %p193 = por %p191, %p192
      %p194 = scmp.ne.s32.totalorder %s183, %s186
      %p195 = scmp.eq.s32.totalorder %s26, 2
      %p196 = por %p194, %p195
      %p197 = scmp.ne.s32.totalorder %s186, %s187
      %p198 = scmp.eq.s32.totalorder %s26, 0
      %p199 = por %p197, %p198
      %p200 = scmp.ne.s32.totalorder %s186, %s187
      %p201 = scmp.eq.s32.totalorder %s27, 2
      %p202 = por %p200, %p201
      %p204 = scmp.ne.s32.totalorder %s187, %s203
      %p205 = scmp.eq.s32.totalorder %s27, 0
      %p206 = por %p204, %p205
      %p207 = scmp.le.s32.totalorder 1, %s21
      %p208 = scmp.lt.s32.totalorder %s21, 4
      %p209 = pnand %p207, %p208
      %p210 = pneg %p209
      // Predicated region
      $region9: #{tpu_custom_call.1} parent=5 // pred_check
        _
      $region10: #{tpu_custom_call.1} parent=5 // pred_check_branch
        %212 = sbr.rel (%p209) target = $region12
      $region11: #{tpu_custom_call.1} parent=5 // pred_region
        %s213 = ssub.s32 %s21, 1
        // Predicated region
        $region13: #{tpu_custom_call.1} parent=11 // pred_check
          %p214 = pneg %p68
        $region14: #{tpu_custom_call.1} parent=11 // pred_check_branch
          %216 = sbr.rel (%p214) target = $region16
        $region15: #{tpu_custom_call.1} parent=11 // pred_region
          %s218 = ssub.s32 4096, 4096
          %219 = vsyncadd [#allocation6], %s218
          %s220 = sshll.u32 [#allocation5], 4
          %s221 = int_to_ptr.vmem [resolvable:$true] %s220
          %226 = dma.hbm_to_vmem [thread:$0]  %s1, 4096, %s221, [#allocation6], 256, 256, 16
        $region16: #{tpu_custom_call.1} parent=11 // pred_fallthru
          _
        // Predicated region
        $region17: #{tpu_custom_call.1} parent=11 // pred_check
          %p227 = pneg %p89
        $region18: #{tpu_custom_call.1} parent=11 // pred_check_branch
          %229 = sbr.rel (%p227) target = $region20
        $region19: #{tpu_custom_call.1} parent=11 // pred_region
          %s231 = ssub.s32 64, 64
          %232 = vsyncadd [#allocation6], %s231
          %s234 = sshll.u32 [#allocation7], 4
          %s235 = int_to_ptr.vmem [resolvable:$true] %s234
          %237 = dma.hbm_to_vmem [thread:$0]  %s2, 64, %s235, [#allocation6]
        $region20: #{tpu_custom_call.1} parent=11 // pred_fallthru
          _
        // Predicated region
        $region21: #{tpu_custom_call.1} parent=11 // pred_check
          %p238 = pneg %p110
        $region22: #{tpu_custom_call.1} parent=11 // pred_check_branch
          %240 = sbr.rel (%p238) target = $region24
        $region23: #{tpu_custom_call.1} parent=11 // pred_region
          %s242 = ssub.s32 16384, 16384
          %243 = vsyncadd [#allocation9], %s242
          %s244 = sshll.u32 [#allocation8], 4
          %s245 = int_to_ptr.vmem [resolvable:$true] %s244
          %250 = dma.hbm_to_vmem [thread:$0]  %s3, 16384, %s245, [#allocation9], 256, 256, 16
        $region24: #{tpu_custom_call.1} parent=11 // pred_fallthru
          _
        // Predicated region
        $region25: #{tpu_custom_call.1} parent=11 // pred_check
          %p251 = pneg %p131
        $region26: #{tpu_custom_call.1} parent=11 // pred_check_branch
          %253 = sbr.rel (%p251) target = $region28
        $region27: #{tpu_custom_call.1} parent=11 // pred_region
          _
        $region28: #{tpu_custom_call.1} parent=11 // pred_fallthru
          _
        // Predicated region
        $region29: #{tpu_custom_call.1} parent=11 // pred_check
          %p254 = pneg %p152
        $region30: #{tpu_custom_call.1} parent=11 // pred_check_branch
          %256 = sbr.rel (%p254) target = $region32
        $region31: #{tpu_custom_call.1} parent=11 // pred_region
          %s258 = ssub.s32 4096, 4096
          %259 = vsyncadd [#allocation9], %s258
          %s260 = sshll.u32 [#allocation10], 4
          %s261 = int_to_ptr.vmem [resolvable:$true] %s260
          %266 = dma.hbm_to_vmem [thread:$0]  %s5, 4096, %s261, [#allocation9], 64, 64, 4
        $region32: #{tpu_custom_call.1} parent=11 // pred_fallthru
          _
        // Predicated region
        $region33: #{tpu_custom_call.1} parent=11 // pred_check
          %p267 = pneg %p173
        $region34: #{tpu_custom_call.1} parent=11 // pred_check_branch
          %269 = sbr.rel (%p267) target = $region36
        $region35: #{tpu_custom_call.1} parent=11 // pred_region
          _
        $region36: #{tpu_custom_call.1} parent=11 // pred_fallthru
          _
      $region12: #{tpu_custom_call.1} parent=5 // pred_fallthru
        _
      %p270 = scmp.lt.s32.totalorder %s21, 3
      // Predicated region
      $region37: #{tpu_custom_call.1} parent=5 // pred_check
        %p271 = pneg %p270
      $region38: #{tpu_custom_call.1} parent=5 // pred_check_branch
        %273 = sbr.rel (%p271) target = $region40
      $region39: #{tpu_custom_call.1} parent=5 // pred_region
        // Predicated region
        $region41: #{tpu_custom_call.1} parent=39 // pred_check
          %p274 = pneg %p41
        $region42: #{tpu_custom_call.1} parent=39 // pred_check_branch
          %276 = sbr.rel (%p274) target = $region44
        $region43: #{tpu_custom_call.1} parent=39 // pred_region
          %s277 = sand.u32 %s31, 1
          %s278 = scalar_lea.sflag [#allocation3], %s277
          %s279 = sand.u32 %s31, 1
          %s280 = smul.addr %s279, 16
          %s281 = scalar_lea.vmem [#allocation2], %s280
          %s282 = smul.u32 2, %s21
          %s284 = ssub.s32 256, 256
          %285 = vsyncadd %s278, %s284
          %s286 = smul.addr %s282, 128
          %s287 = scalar_lea.hbm %s0, %s286
          %s288 = sshll.u32 %s281, 4
          %s289 = int_to_ptr.vmem [resolvable:$true] %s288
          %294 = dma.hbm_to_vmem [thread:$0]  %s287, 256, %s289, %s278, 128, 128, 8
        $region44: #{tpu_custom_call.1} parent=39 // pred_fallthru
          _
      $region40: #{tpu_custom_call.1} parent=5 // pred_fallthru
        _
      %p295 = scmp.le.s32.totalorder 1, %s21
      %p296 = scmp.lt.s32.totalorder %s21, 4
      %p297 = pnand %p295, %p296
      %p298 = pneg %p297
      // Predicated region
      $region45: #{tpu_custom_call.1} parent=5 // pred_check
        _
      $region46: #{tpu_custom_call.1} parent=5 // pred_check_branch
        %300 = sbr.rel (%p297) target = $region48
      $region47: #{tpu_custom_call.1} parent=5 // pred_region
        %s301 = ssub.s32 %s21, 1
        %s302 = sand.u32 %s34, 1
        %s303 = scalar_lea.sflag [#allocation3], %s302
        %s304 = sand.u32 %s34, 1
        %s305 = smul.addr %s304, 16
        %s306 = scalar_lea.vmem [#allocation2], %s305
        // Predicated region
        $region49: #{tpu_custom_call.1} parent=47 // pred_check
          %p307 = pneg %p47
        $region50: #{tpu_custom_call.1} parent=47 // pred_check_branch
          %309 = sbr.rel (%p307) target = $region52
        $region51: #{tpu_custom_call.1} parent=47 // pred_region
          %310 = dma.done %s303, 256
        $region52: #{tpu_custom_call.1} parent=47 // pred_fallthru
          _
        // Predicated region
        $region53: #{tpu_custom_call.1} parent=47 // pred_check
          %p311 = pneg %p68
        $region54: #{tpu_custom_call.1} parent=47 // pred_check_branch
          %313 = sbr.rel (%p311) target = $region56
        $region55: #{tpu_custom_call.1} parent=47 // pred_region
          %314 = dma.done [#allocation6], 4096
        $region56: #{tpu_custom_call.1} parent=47 // pred_fallthru
          _
        // Predicated region
        $region57: #{tpu_custom_call.1} parent=47 // pred_check
          %p315 = pneg %p89
        $region58: #{tpu_custom_call.1} parent=47 // pred_check_branch
          %317 = sbr.rel (%p315) target = $region60
        $region59: #{tpu_custom_call.1} parent=47 // pred_region
          %318 = dma.done [#allocation6], 64
        $region60: #{tpu_custom_call.1} parent=47 // pred_fallthru
          _
        // Predicated region
        $region61: #{tpu_custom_call.1} parent=47 // pred_check
          %p319 = pneg %p110
        $region62: #{tpu_custom_call.1} parent=47 // pred_check_branch
          %321 = sbr.rel (%p319) target = $region64
        $region63: #{tpu_custom_call.1} parent=47 // pred_region
          %322 = dma.done [#allocation9], 16384
        $region64: #{tpu_custom_call.1} parent=47 // pred_fallthru
          _
        // Predicated region
        $region65: #{tpu_custom_call.1} parent=47 // pred_check
          %p323 = pneg %p152
        $region66: #{tpu_custom_call.1} parent=47 // pred_check_branch
          %325 = sbr.rel (%p323) target = $region68
        $region67: #{tpu_custom_call.1} parent=47 // pred_region
          %326 = dma.done [#allocation9], 4096
        $region68: #{tpu_custom_call.1} parent=47 // pred_fallthru
          _
        %s327 = sand.u32 %s34, 1
        %s328 = scalar_lea.sflag [#allocation3], %s327
        %s329 = sand.u32 %s34, 1
        %s330 = smul.addr %s329, 16
        %s331 = scalar_lea.vmem [#allocation2], %s330
        %p332 = pneg %p47
        %p333 = pneg %p44
        %p334 = pneg %p68
        %p335 = pneg %p65
        %p336 = pneg %p89
        %p337 = pneg %p86
        %p338 = pneg %p110
        %p339 = pneg %p107
        %p340 = pneg %p131
        %p341 = pneg %p128
        %p342 = pneg %p152
        %p343 = pneg %p149
        %p344 = pneg %p173
        %p345 = pneg %p170
        %p346 = pneg %p199
        %p347 = pneg %p196
        %s348 = sand.u32 %s186, 1
        %s349 = scalar_lea.sflag [#allocation4], %s348
        %s350 = sand.u32 %s186, 1
        %s351 = smul.addr %s350, 16
        %s352 = scalar_lea.vmem [#allocation11], %s351
        %s353 = smul.u32 2, %s26
        %s354 = smul.u32 2, %s26
        %v356 = vld [vmem:[%s306] sm:$0xff]
        %v357 = vld [vmem:[%s306 + $0x8] sm:$0xff]
        %v358 = vpack.c.bf16 %v357, %v356
        %v359 = vld [vmem:[#allocation5] sm:$0xff]
        %v360 = vld [vmem:[#allocation5 + $0x8] sm:$0xff]
        %v361 = vld [vmem:[#allocation5 + $0x10] sm:$0xff]
        %v362 = vld [vmem:[#allocation5 + $0x18] sm:$0xff]
        %v363 = vld [vmem:[#allocation5 + $0x20] sm:$0xff]
        %v364 = vld [vmem:[#allocation5 + $0x28] sm:$0xff]
        %v365 = vld [vmem:[#allocation5 + $0x30] sm:$0xff]
        %v366 = vld [vmem:[#allocation5 + $0x38] sm:$0xff]
        %v367 = vld [vmem:[#allocation5 + $0x40] sm:$0xff]
        %v368 = vld [vmem:[#allocation5 + $0x48] sm:$0xff]
        %v369 = vld [vmem:[#allocation5 + $0x50] sm:$0xff]
        %v370 = vld [vmem:[#allocation5 + $0x58] sm:$0xff]
        %v371 = vld [vmem:[#allocation5 + $0x60] sm:$0xff]
        %v372 = vld [vmem:[#allocation5 + $0x68] sm:$0xff]
        %v373 = vld [vmem:[#allocation5 + $0x70] sm:$0xff]
        %v374 = vld [vmem:[#allocation5 + $0x78] sm:$0xff]
        %v375 = vld [vmem:[#allocation5 + $0x80] sm:$0xff]
        %v376 = vld [vmem:[#allocation5 + $0x88] sm:$0xff]
        %v377 = vld [vmem:[#allocation5 + $0x90] sm:$0xff]
        %v378 = vld [vmem:[#allocation5 + $0x98] sm:$0xff]
        %v379 = vld [vmem:[#allocation5 + $0xa0] sm:$0xff]
        %v380 = vld [vmem:[#allocation5 + $0xa8] sm:$0xff]
        %v381 = vld [vmem:[#allocation5 + $0xb0] sm:$0xff]
        %v382 = vld [vmem:[#allocation5 + $0xb8] sm:$0xff]
        %v383 = vld [vmem:[#allocation5 + $0xc0] sm:$0xff]
        %v384 = vld [vmem:[#allocation5 + $0xc8] sm:$0xff]
        %v385 = vld [vmem:[#allocation5 + $0xd0] sm:$0xff]
        %v386 = vld [vmem:[#allocation5 + $0xd8] sm:$0xff]
        %v387 = vld [vmem:[#allocation5 + $0xe0] sm:$0xff]
        %v388 = vld [vmem:[#allocation5 + $0xe8] sm:$0xff]
        %v389 = vld [vmem:[#allocation5 + $0xf0] sm:$0xff]
        %v390 = vld [vmem:[#allocation5 + $0xf8] sm:$0xff]
        %v391 = vld [vmem:[#allocation7] sm:$0xf]
        %v393 = vlaneseq
        %v394 = vshrl.u32 %v393, 7
        %v395 = vsub.s32 0, %v394
        %v396 = vrot.slane %v391, %v395
        %v397 = vlaneseq
        %v398 = vshrl.u32 %v397, 7
        %v399 = vsub.s32 1, %v398
        %v400 = vrot.slane %v391, %v399
        %v401 = vlaneseq
        %v402 = vshrl.u32 %v401, 7
        %v403 = vsub.s32 2, %v402
        %v404 = vrot.slane %v391, %v403
        %v405 = vlaneseq
        %v406 = vshrl.u32 %v405, 7
        %v407 = vsub.s32 3, %v406
        %v408 = vrot.slane %v391, %v407
        %v445 = vunpack.c.l.b16 %v359
        %v446 = vunpack.c.h.b16 %v359
        %v447 = vunpack.c.l.b16 %v360
        %v448 = vunpack.c.h.b16 %v360
        %v449 = vunpack.c.l.b16 %v361
        %v450 = vunpack.c.h.b16 %v361
        %v451 = vunpack.c.l.b16 %v362
        %v452 = vunpack.c.h.b16 %v362
        %v453 = vunpack.c.l.b16 %v363
        %v454 = vunpack.c.h.b16 %v363
        %v455 = vunpack.c.l.b16 %v364
        %v456 = vunpack.c.h.b16 %v364
        %v457 = vunpack.c.l.b16 %v365
        %v458 = vunpack.c.h.b16 %v365
        %v459 = vunpack.c.l.b16 %v366
        %v460 = vunpack.c.h.b16 %v366
        %v461 = vunpack.c.l.b16 %v367
        %v462 = vunpack.c.h.b16 %v367
        %v463 = vunpack.c.l.b16 %v368
        %v464 = vunpack.c.h.b16 %v368
        %v465 = vunpack.c.l.b16 %v369
        %v466 = vunpack.c.h.b16 %v369
        %v467 = vunpack.c.l.b16 %v370
        %v468 = vunpack.c.h.b16 %v370
        %v469 = vunpack.c.l.b16 %v371
        %v470 = vunpack.c.h.b16 %v371
        %v471 = vunpack.c.l.b16 %v372
        %v472 = vunpack.c.h.b16 %v372
        %v473 = vunpack.c.l.b16 %v373
        %v474 = vunpack.c.h.b16 %v373
        %v475 = vunpack.c.l.b16 %v374
        %v476 = vunpack.c.h.b16 %v374
        %v477 = vunpack.c.l.b16 %v375
        %v478 = vunpack.c.h.b16 %v375
        %v479 = vunpack.c.l.b16 %v376
        %v480 = vunpack.c.h.b16 %v376
        %v481 = vunpack.c.l.b16 %v377
        %v482 = vunpack.c.h.b16 %v377
        %v483 = vunpack.c.l.b16 %v378
        %v484 = vunpack.c.h.b16 %v378
        %v485 = vunpack.c.l.b16 %v379
        %v486 = vunpack.c.h.b16 %v379
        %v487 = vunpack.c.l.b16 %v380
        %v488 = vunpack.c.h.b16 %v380
        %v489 = vunpack.c.l.b16 %v381
        %v490 = vunpack.c.h.b16 %v381
        %v491 = vunpack.c.l.b16 %v382
        %v492 = vunpack.c.h.b16 %v382
        %v493 = vunpack.c.l.b16 %v383
        %v494 = vunpack.c.h.b16 %v383
        %v495 = vunpack.c.l.b16 %v384
        %v496 = vunpack.c.h.b16 %v384
        %v497 = vunpack.c.l.b16 %v385
        %v498 = vunpack.c.h.b16 %v385
        %v499 = vunpack.c.l.b16 %v386
        %v500 = vunpack.c.h.b16 %v386
        %v501 = vunpack.c.l.b16 %v387
        %v502 = vunpack.c.h.b16 %v387
        %v503 = vunpack.c.l.b16 %v388
        %v504 = vunpack.c.h.b16 %v388
        %v505 = vunpack.c.l.b16 %v389
        %v506 = vunpack.c.h.b16 %v389
        %v507 = vunpack.c.l.b16 %v390
        %v508 = vunpack.c.h.b16 %v390
        %v509 = vpack.c.b16 %v449, %v445
        %v510 = vpack.c.b16 %v450, %v446
        %v511 = vpack.c.b16 %v451, %v447
        %v512 = vpack.c.b16 %v452, %v448
        %v513 = vpack.c.b16 %v457, %v453
        %v514 = vpack.c.b16 %v458, %v454
        %v515 = vpack.c.b16 %v459, %v455
        %v516 = vpack.c.b16 %v460, %v456
        %v517 = vpack.c.b16 %v465, %v461
        %v518 = vpack.c.b16 %v466, %v462
        %v519 = vpack.c.b16 %v467, %v463
        %v520 = vpack.c.b16 %v468, %v464
        %v521 = vpack.c.b16 %v473, %v469
        %v522 = vpack.c.b16 %v474, %v470
        %v523 = vpack.c.b16 %v475, %v471
        %v524 = vpack.c.b16 %v476, %v472
        %v525 = vpack.c.b16 %v481, %v477
        %v526 = vpack.c.b16 %v482, %v478
        %v527 = vpack.c.b16 %v483, %v479
        %v528 = vpack.c.b16 %v484, %v480
        %v529 = vpack.c.b16 %v489, %v485
        %v530 = vpack.c.b16 %v490, %v486
        %v531 = vpack.c.b16 %v491, %v487
        %v532 = vpack.c.b16 %v492, %v488
        %v533 = vpack.c.b16 %v497, %v493
        %v534 = vpack.c.b16 %v498, %v494
        %v535 = vpack.c.b16 %v499, %v495
        %v536 = vpack.c.b16 %v500, %v496
        %v537 = vpack.c.b16 %v505, %v501
        %v538 = vpack.c.b16 %v506, %v502
        %v539 = vpack.c.b16 %v507, %v503
        %v540 = vpack.c.b16 %v508, %v504
        %573 = vmatprep.subr.bf16.mxu0 %v538
        %574 = vmatpush1.bf16.msra.mxu0 %v537
        %575 = vmatprep.subr.bf16.mxu0 %v534
        %576 = vmatpush1.bf16.msra.mxu0 %v533
        %577 = vmatprep.subr.bf16.mxu0 %v530
        %578 = vmatpush1.bf16.msra.mxu0 %v529
        %579 = vmatprep.subr.bf16.mxu0 %v526
        %580 = vmatpush1.bf16.msra.mxu0 %v525
        %581 = vmatprep.subr.bf16.mxu0 %v522
        %582 = vmatpush1.bf16.msra.mxu0 %v521
        %583 = vmatprep.subr.bf16.mxu0 %v518
        %584 = vmatpush1.bf16.msra.mxu0 %v517
        %585 = vmatprep.subr.bf16.mxu0 %v514
        %586 = vmatpush1.bf16.msra.mxu0 %v513
        %587 = vmatprep.subr.bf16.mxu0 %v510
        %588 = vmatpush1.bf16.msra.mxu0 %v509
        %589 = vmatprep.subr.bf16.mxu0 0
        %590 = vmatpush2.bf16.msra.mxu0 0
        %591 = vmatprep.subr.bf16.mxu0 0
        %592 = vmatpush2.bf16.msra.mxu0 0
        %593 = vmatprep.subr.bf16.mxu0 0
        %594 = vmatpush2.bf16.msra.mxu0 0
        %595 = vmatprep.subr.bf16.mxu0 0
        %596 = vmatpush2.bf16.msra.mxu0 0
        %597 = vmatprep.subr.bf16.mxu0 0
        %598 = vmatpush2.bf16.msra.mxu0 0
        %599 = vmatprep.subr.bf16.mxu0 0
        %600 = vmatpush2.bf16.msra.mxu0 0
        %601 = vmatprep.subr.bf16.mxu0 0
        %602 = vmatpush2.bf16.msra.mxu0 0
        %603 = vmatprep.subr.bf16.mxu0 0
        %604 = vmatpush2.bf16.msra.mxu0 0
        %605 = vmatprep.mubr.bf16.mxu0 0
        %606 = vmatmul.mubr.bf16.gmra.mxu0 %v358
        %v607 = vpop.f32.mrf.mxu0
        %v608 = vadd.f32 %v396, %v607
        %v609 = vpop.f32.mrf.mxu0
        %v610 = vadd.f32 %v400, %v609
        %v611 = vpop.f32.mrf.mxu0
        %v612 = vadd.f32 %v396, %v611
        %v613 = vpop.f32.mrf.mxu0
        %v614 = vadd.f32 %v400, %v613
        %615 = vdwg.mxu0
        %616 = vmatprep.subr.bf16.mxu0 %v540
        %617 = vmatpush1.bf16.msra.mxu0 %v539
        %618 = vmatprep.subr.bf16.mxu0 %v536
        %619 = vmatpush1.bf16.msra.mxu0 %v535
        %620 = vmatprep.subr.bf16.mxu0 %v532
        %621 = vmatpush1.bf16.msra.mxu0 %v531
        %622 = vmatprep.subr.bf16.mxu0 %v528
        %623 = vmatpush1.bf16.msra.mxu0 %v527
        %624 = vmatprep.subr.bf16.mxu0 %v524
        %625 = vmatpush1.bf16.msra.mxu0 %v523
        %626 = vmatprep.subr.bf16.mxu0 %v520
        %627 = vmatpush1.bf16.msra.mxu0 %v519
        %628 = vmatprep.subr.bf16.mxu0 %v516
        %629 = vmatpush1.bf16.msra.mxu0 %v515
        %630 = vmatprep.subr.bf16.mxu0 %v512
        %631 = vmatpush1.bf16.msra.mxu0 %v511
        %632 = vmatprep.subr.bf16.mxu0 0
        %633 = vmatpush2.bf16.msra.mxu0 0
        %634 = vmatprep.subr.bf16.mxu0 0
        %635 = vmatpush2.bf16.msra.mxu0 0
        %636 = vmatprep.subr.bf16.mxu0 0
        %637 = vmatpush2.bf16.msra.mxu0 0
        %638 = vmatprep.subr.bf16.mxu0 0
        %639 = vmatpush2.bf16.msra.mxu0 0
        %640 = vmatprep.subr.bf16.mxu0 0
        %641 = vmatpush2.bf16.msra.mxu0 0
        %642 = vmatprep.subr.bf16.mxu0 0
        %643 = vmatpush2.bf16.msra.mxu0 0
        %644 = vmatprep.subr.bf16.mxu0 0
        %645 = vmatpush2.bf16.msra.mxu0 0
        %646 = vmatprep.subr.bf16.mxu0 0
        %647 = vmatpush2.bf16.msra.mxu0 0
        %648 = vmatprep.mubr.bf16.mxu0 0
        %649 = vmatmul.mubr.bf16.gmra.mxu0 %v358
        %v650 = vpop.f32.mrf.mxu0
        %v651 = vadd.f32 %v404, %v650
        %v652 = vpop.f32.mrf.mxu0
        %v653 = vadd.f32 %v408, %v652
        %v654 = vpop.f32.mrf.mxu0
        %v655 = vadd.f32 %v404, %v654
        %v656 = vpop.f32.mrf.mxu0
        %v657 = vadd.f32 %v408, %v656
        %658 = vdwg.mxu0
        %v659 = vmax.f32 %v608, 0.0
        %v660 = vmax.f32 %v610, 0.0
        %v661 = vmax.f32 %v651, 0.0
        %v662 = vmax.f32 %v653, 0.0
        %v663 = vmax.f32 %v612, 0.0
        %v664 = vmax.f32 %v614, 0.0
        %v665 = vmax.f32 %v655, 0.0
        %v666 = vmax.f32 %v657, 0.0
        %v667 = vpack.c.bf16 %v663, %v659
        %v668 = vpack.c.bf16 %v664, %v660
        %v669 = vpack.c.bf16 %v665, %v661
        %v670 = vpack.c.bf16 %v666, %v662
        %v671 = vld [vmem:[#allocation8] sm:$0xff]
        %v672 = vld [vmem:[#allocation8 + $0x8] sm:$0xff]
        %v673 = vld [vmem:[#allocation8 + $0x10] sm:$0xff]
        %v674 = vld [vmem:[#allocation8 + $0x18] sm:$0xff]
        %v675 = vld [vmem:[#allocation8 + $0x20] sm:$0xff]
        %v676 = vld [vmem:[#allocation8 + $0x28] sm:$0xff]
        %v677 = vld [vmem:[#allocation8 + $0x30] sm:$0xff]
        %v678 = vld [vmem:[#allocation8 + $0x38] sm:$0xff]
        %v679 = vld [vmem:[#allocation8 + $0x40] sm:$0xff]
        %v680 = vld [vmem:[#allocation8 + $0x48] sm:$0xff]
        %v681 = vld [vmem:[#allocation8 + $0x50] sm:$0xff]
        %v682 = vld [vmem:[#allocation8 + $0x58] sm:$0xff]
        %v683 = vld [vmem:[#allocation8 + $0x60] sm:$0xff]
        %v684 = vld [vmem:[#allocation8 + $0x68] sm:$0xff]
        %v685 = vld [vmem:[#allocation8 + $0x70] sm:$0xff]
        %v686 = vld [vmem:[#allocation8 + $0x78] sm:$0xff]
        %v687 = vld [vmem:[#allocation8 + $0x80] sm:$0xff]
        %v688 = vld [vmem:[#allocation8 + $0x88] sm:$0xff]
        %v689 = vld [vmem:[#allocation8 + $0x90] sm:$0xff]
        %v690 = vld [vmem:[#allocation8 + $0x98] sm:$0xff]
        %v691 = vld [vmem:[#allocation8 + $0xa0] sm:$0xff]
        %v692 = vld [vmem:[#allocation8 + $0xa8] sm:$0xff]
        %v693 = vld [vmem:[#allocation8 + $0xb0] sm:$0xff]
        %v694 = vld [vmem:[#allocation8 + $0xb8] sm:$0xff]
        %v695 = vld [vmem:[#allocation8 + $0xc0] sm:$0xff]
        %v696 = vld [vmem:[#allocation8 + $0xc8] sm:$0xff]
        %v697 = vld [vmem:[#allocation8 + $0xd0] sm:$0xff]
        %v698 = vld [vmem:[#allocation8 + $0xd8] sm:$0xff]
        %v699 = vld [vmem:[#allocation8 + $0xe0] sm:$0xff]
        %v700 = vld [vmem:[#allocation8 + $0xe8] sm:$0xff]
        %v701 = vld [vmem:[#allocation8 + $0xf0] sm:$0xff]
        %v702 = vld [vmem:[#allocation8 + $0xf8] sm:$0xff]
        %v703 = vld [vmem:[#allocation8 + $0x100] sm:$0xff]
        %v704 = vld [vmem:[#allocation8 + $0x108] sm:$0xff]
        %v705 = vld [vmem:[#allocation8 + $0x110] sm:$0xff]
        %v706 = vld [vmem:[#allocation8 + $0x118] sm:$0xff]
        %v707 = vld [vmem:[#allocation8 + $0x120] sm:$0xff]
        %v708 = vld [vmem:[#allocation8 + $0x128] sm:$0xff]
        %v709 = vld [vmem:[#allocation8 + $0x130] sm:$0xff]
        %v710 = vld [vmem:[#allocation8 + $0x138] sm:$0xff]
        %v711 = vld [vmem:[#allocation8 + $0x140] sm:$0xff]
        %v712 = vld [vmem:[#allocation8 + $0x148] sm:$0xff]
        %v713 = vld [vmem:[#allocation8 + $0x150] sm:$0xff]
        %v714 = vld [vmem:[#allocation8 + $0x158] sm:$0xff]
        %v715 = vld [vmem:[#allocation8 + $0x160] sm:$0xff]
        %v716 = vld [vmem:[#allocation8 + $0x168] sm:$0xff]
        %v717 = vld [vmem:[#allocation8 + $0x170] sm:$0xff]
        %v718 = vld [vmem:[#allocation8 + $0x178] sm:$0xff]
        %v719 = vld [vmem:[#allocation8 + $0x180] sm:$0xff]
        %v720 = vld [vmem:[#allocation8 + $0x188] sm:$0xff]
        %v721 = vld [vmem:[#allocation8 + $0x190] sm:$0xff]
        %v722 = vld [vmem:[#allocation8 + $0x198] sm:$0xff]
        %v723 = vld [vmem:[#allocation8 + $0x1a0] sm:$0xff]
        %v724 = vld [vmem:[#allocation8 + $0x1a8] sm:$0xff]
        %v725 = vld [vmem:[#allocation8 + $0x1b0] sm:$0xff]
        %v726 = vld [vmem:[#allocation8 + $0x1b8] sm:$0xff]
        %v727 = vld [vmem:[#allocation8 + $0x1c0] sm:$0xff]
        %v728 = vld [vmem:[#allocation8 + $0x1c8] sm:$0xff]
        %v729 = vld [vmem:[#allocation8 + $0x1d0] sm:$0xff]
        %v730 = vld [vmem:[#allocation8 + $0x1d8] sm:$0xff]
        %v731 = vld [vmem:[#allocation8 + $0x1e0] sm:$0xff]
        %v732 = vld [vmem:[#allocation8 + $0x1e8] sm:$0xff]
        %v733 = vld [vmem:[#allocation8 + $0x1f0] sm:$0xff]
        %v734 = vld [vmem:[#allocation8 + $0x1f8] sm:$0xff]
        %v735 = vld [vmem:[#allocation8 + $0x200] sm:$0xff]
        %v736 = vld [vmem:[#allocation8 + $0x208] sm:$0xff]
        %v737 = vld [vmem:[#allocation8 + $0x210] sm:$0xff]
        %v738 = vld [vmem:[#allocation8 + $0x218] sm:$0xff]
        %v739 = vld [vmem:[#allocation8 + $0x220] sm:$0xff]
        %v740 = vld [vmem:[#allocation8 + $0x228] sm:$0xff]
        %v741 = vld [vmem:[#allocation8 + $0x230] sm:$0xff]
        %v742 = vld [vmem:[#allocation8 + $0x238] sm:$0xff]
        %v743 = vld [vmem:[#allocation8 + $0x240] sm:$0xff]
        %v744 = vld [vmem:[#allocation8 + $0x248] sm:$0xff]
        %v745 = vld [vmem:[#allocation8 + $0x250] sm:$0xff]
        %v746 = vld [vmem:[#allocation8 + $0x258] sm:$0xff]
        %v747 = vld [vmem:[#allocation8 + $0x260] sm:$0xff]
        %v748 = vld [vmem:[#allocation8 + $0x268] sm:$0xff]
        %v749 = vld [vmem:[#allocation8 + $0x270] sm:$0xff]
        %v750 = vld [vmem:[#allocation8 + $0x278] sm:$0xff]
        %v751 = vld [vmem:[#allocation8 + $0x280] sm:$0xff]
        %v752 = vld [vmem:[#allocation8 + $0x288] sm:$0xff]
        %v753 = vld [vmem:[#allocation8 + $0x290] sm:$0xff]
        %v754 = vld [vmem:[#allocation8 + $0x298] sm:$0xff]
        %v755 = vld [vmem:[#allocation8 + $0x2a0] sm:$0xff]
        %v756 = vld [vmem:[#allocation8 + $0x2a8] sm:$0xff]
        %v757 = vld [vmem:[#allocation8 + $0x2b0] sm:$0xff]
        %v758 = vld [vmem:[#allocation8 + $0x2b8] sm:$0xff]
        %v759 = vld [vmem:[#allocation8 + $0x2c0] sm:$0xff]
        %v760 = vld [vmem:[#allocation8 + $0x2c8] sm:$0xff]
        %v761 = vld [vmem:[#allocation8 + $0x2d0] sm:$0xff]
        %v762 = vld [vmem:[#allocation8 + $0x2d8] sm:$0xff]
        %v763 = vld [vmem:[#allocation8 + $0x2e0] sm:$0xff]
        %v764 = vld [vmem:[#allocation8 + $0x2e8] sm:$0xff]
        %v765 = vld [vmem:[#allocation8 + $0x2f0] sm:$0xff]
        %v766 = vld [vmem:[#allocation8 + $0x2f8] sm:$0xff]
        %v767 = vld [vmem:[#allocation8 + $0x300] sm:$0xff]
        %v768 = vld [vmem:[#allocation8 + $0x308] sm:$0xff]
        %v769 = vld [vmem:[#allocation8 + $0x310] sm:$0xff]
        %v770 = vld [vmem:[#allocation8 + $0x318] sm:$0xff]
        %v771 = vld [vmem:[#allocation8 + $0x320] sm:$0xff]
        %v772 = vld [vmem:[#allocation8 + $0x328] sm:$0xff]
        %v773 = vld [vmem:[#allocation8 + $0x330] sm:$0xff]
        %v774 = vld [vmem:[#allocation8 + $0x338] sm:$0xff]
        %v775 = vld [vmem:[#allocation8 + $0x340] sm:$0xff]
        %v776 = vld [vmem:[#allocation8 + $0x348] sm:$0xff]
        %v777 = vld [vmem:[#allocation8 + $0x350] sm:$0xff]
        %v778 = vld [vmem:[#allocation8 + $0x358] sm:$0xff]
        %v779 = vld [vmem:[#allocation8 + $0x360] sm:$0xff]
        %v780 = vld [vmem:[#allocation8 + $0x368] sm:$0xff]
        %v781 = vld [vmem:[#allocation8 + $0x370] sm:$0xff]
        %v782 = vld [vmem:[#allocation8 + $0x378] sm:$0xff]
        %v783 = vld [vmem:[#allocation8 + $0x380] sm:$0xff]
        %v784 = vld [vmem:[#allocation8 + $0x388] sm:$0xff]
        %v785 = vld [vmem:[#allocation8 + $0x390] sm:$0xff]
        %v786 = vld [vmem:[#allocation8 + $0x398] sm:$0xff]
        %v787 = vld [vmem:[#allocation8 + $0x3a0] sm:$0xff]
        %v788 = vld [vmem:[#allocation8 + $0x3a8] sm:$0xff]
        %v789 = vld [vmem:[#allocation8 + $0x3b0] sm:$0xff]
        %v790 = vld [vmem:[#allocation8 + $0x3b8] sm:$0xff]
        %v791 = vld [vmem:[#allocation8 + $0x3c0] sm:$0xff]
        %v792 = vld [vmem:[#allocation8 + $0x3c8] sm:$0xff]
        %v793 = vld [vmem:[#allocation8 + $0x3d0] sm:$0xff]
        %v794 = vld [vmem:[#allocation8 + $0x3d8] sm:$0xff]
        %v795 = vld [vmem:[#allocation8 + $0x3e0] sm:$0xff]
        %v796 = vld [vmem:[#allocation8 + $0x3e8] sm:$0xff]
        %v797 = vld [vmem:[#allocation8 + $0x3f0] sm:$0xff]
        %v798 = vld [vmem:[#allocation8 + $0x3f8] sm:$0xff]
        %v799 = vld [vmem:[%s4] sm:$0xf]
        %v801 = vlaneseq
        %v802 = vshrl.u32 %v801, 7
        %v803 = vsub.s32 0, %v802
        %v804 = vrot.slane %v799, %v803
        %v805 = vlaneseq
        %v806 = vshrl.u32 %v805, 7
        %v807 = vsub.s32 1, %v806
        %v808 = vrot.slane %v799, %v807
        %v809 = vlaneseq
        %v810 = vshrl.u32 %v809, 7
        %v811 = vsub.s32 2, %v810
        %v812 = vrot.slane %v799, %v811
        %v813 = vlaneseq
        %v814 = vshrl.u32 %v813, 7
        %v815 = vsub.s32 3, %v814
        %v816 = vrot.slane %v799, %v815
        %v949 = vunpack.c.l.b16 %v671
        %v950 = vunpack.c.h.b16 %v671
        %v951 = vunpack.c.l.b16 %v672
        %v952 = vunpack.c.h.b16 %v672
        %v953 = vunpack.c.l.b16 %v673
        %v954 = vunpack.c.h.b16 %v673
        %v955 = vunpack.c.l.b16 %v674
        %v956 = vunpack.c.h.b16 %v674
        %v957 = vunpack.c.l.b16 %v675
        %v958 = vunpack.c.h.b16 %v675
        %v959 = vunpack.c.l.b16 %v676
        %v960 = vunpack.c.h.b16 %v676
        %v961 = vunpack.c.l.b16 %v677
        %v962 = vunpack.c.h.b16 %v677
        %v963 = vunpack.c.l.b16 %v678
        %v964 = vunpack.c.h.b16 %v678
        %v965 = vunpack.c.l.b16 %v679
        %v966 = vunpack.c.h.b16 %v679
        %v967 = vunpack.c.l.b16 %v680
        %v968 = vunpack.c.h.b16 %v680
        %v969 = vunpack.c.l.b16 %v681
        %v970 = vunpack.c.h.b16 %v681
        %v971 = vunpack.c.l.b16 %v682
        %v972 = vunpack.c.h.b16 %v682
        %v973 = vunpack.c.l.b16 %v683
        %v974 = vunpack.c.h.b16 %v683
        %v975 = vunpack.c.l.b16 %v684
        %v976 = vunpack.c.h.b16 %v684
        %v977 = vunpack.c.l.b16 %v685
        %v978 = vunpack.c.h.b16 %v685
        %v979 = vunpack.c.l.b16 %v686
        %v980 = vunpack.c.h.b16 %v686
        %v981 = vunpack.c.l.b16 %v687
        %v982 = vunpack.c.h.b16 %v687
        %v983 = vunpack.c.l.b16 %v688
        %v984 = vunpack.c.h.b16 %v688
        %v985 = vunpack.c.l.b16 %v689
        %v986 = vunpack.c.h.b16 %v689
        %v987 = vunpack.c.l.b16 %v690
        %v988 = vunpack.c.h.b16 %v690
        %v989 = vunpack.c.l.b16 %v691
        %v990 = vunpack.c.h.b16 %v691
        %v991 = vunpack.c.l.b16 %v692
        %v992 = vunpack.c.h.b16 %v692
        %v993 = vunpack.c.l.b16 %v693
        %v994 = vunpack.c.h.b16 %v693
        %v995 = vunpack.c.l.b16 %v694
        %v996 = vunpack.c.h.b16 %v694
        %v997 = vunpack.c.l.b16 %v695
        %v998 = vunpack.c.h.b16 %v695
        %v999 = vunpack.c.l.b16 %v696
        %v1000 = vunpack.c.h.b16 %v696
        %v1001 = vunpack.c.l.b16 %v697
        %v1002 = vunpack.c.h.b16 %v697
        %v1003 = vunpack.c.l.b16 %v698
        %v1004 = vunpack.c.h.b16 %v698
        %v1005 = vunpack.c.l.b16 %v699
        %v1006 = vunpack.c.h.b16 %v699
        %v1007 = vunpack.c.l.b16 %v700
        %v1008 = vunpack.c.h.b16 %v700
        %v1009 = vunpack.c.l.b16 %v701
        %v1010 = vunpack.c.h.b16 %v701
        %v1011 = vunpack.c.l.b16 %v702
        %v1012 = vunpack.c.h.b16 %v702
        %v1013 = vunpack.c.l.b16 %v703
        %v1014 = vunpack.c.h.b16 %v703
        %v1015 = vunpack.c.l.b16 %v704
        %v1016 = vunpack.c.h.b16 %v704
        %v1017 = vunpack.c.l.b16 %v705
        %v1018 = vunpack.c.h.b16 %v705
        %v1019 = vunpack.c.l.b16 %v706
        %v1020 = vunpack.c.h.b16 %v706
        %v1021 = vunpack.c.l.b16 %v707
        %v1022 = vunpack.c.h.b16 %v707
        %v1023 = vunpack.c.l.b16 %v708
        %v1024 = vunpack.c.h.b16 %v708
        %v1025 = vunpack.c.l.b16 %v709
        %v1026 = vunpack.c.h.b16 %v709
        %v1027 = vunpack.c.l.b16 %v710
        %v1028 = vunpack.c.h.b16 %v710
        %v1029 = vunpack.c.l.b16 %v711
        %v1030 = vunpack.c.h.b16 %v711
        %v1031 = vunpack.c.l.b16 %v712
        %v1032 = vunpack.c.h.b16 %v712
        %v1033 = vunpack.c.l.b16 %v713
        %v1034 = vunpack.c.h.b16 %v713
        %v1035 = vunpack.c.l.b16 %v714
        %v1036 = vunpack.c.h.b16 %v714
        %v1037 = vunpack.c.l.b16 %v715
        %v1038 = vunpack.c.h.b16 %v715
        %v1039 = vunpack.c.l.b16 %v716
        %v1040 = vunpack.c.h.b16 %v716
        %v1041 = vunpack.c.l.b16 %v717
        %v1042 = vunpack.c.h.b16 %v717
        %v1043 = vunpack.c.l.b16 %v718
        %v1044 = vunpack.c.h.b16 %v718
        %v1045 = vunpack.c.l.b16 %v719
        %v1046 = vunpack.c.h.b16 %v719
        %v1047 = vunpack.c.l.b16 %v720
        %v1048 = vunpack.c.h.b16 %v720
        %v1049 = vunpack.c.l.b16 %v721
        %v1050 = vunpack.c.h.b16 %v721
        %v1051 = vunpack.c.l.b16 %v722
        %v1052 = vunpack.c.h.b16 %v722
        %v1053 = vunpack.c.l.b16 %v723
        %v1054 = vunpack.c.h.b16 %v723
        %v1055 = vunpack.c.l.b16 %v724
        %v1056 = vunpack.c.h.b16 %v724
        %v1057 = vunpack.c.l.b16 %v725
        %v1058 = vunpack.c.h.b16 %v725
        %v1059 = vunpack.c.l.b16 %v726
        %v1060 = vunpack.c.h.b16 %v726
        %v1061 = vunpack.c.l.b16 %v727
        %v1062 = vunpack.c.h.b16 %v727
        %v1063 = vunpack.c.l.b16 %v728
        %v1064 = vunpack.c.h.b16 %v728
        %v1065 = vunpack.c.l.b16 %v729
        %v1066 = vunpack.c.h.b16 %v729
        %v1067 = vunpack.c.l.b16 %v730
        %v1068 = vunpack.c.h.b16 %v730
        %v1069 = vunpack.c.l.b16 %v731
        %v1070 = vunpack.c.h.b16 %v731
        %v1071 = vunpack.c.l.b16 %v732
        %v1072 = vunpack.c.h.b16 %v732
        %v1073 = vunpack.c.l.b16 %v733
        %v1074 = vunpack.c.h.b16 %v733
        %v1075 = vunpack.c.l.b16 %v734
        %v1076 = vunpack.c.h.b16 %v734
        %v1077 = vunpack.c.l.b16 %v735
        %v1078 = vunpack.c.h.b16 %v735
        %v1079 = vunpack.c.l.b16 %v736
        %v1080 = vunpack.c.h.b16 %v736
        %v1081 = vunpack.c.l.b16 %v737
        %v1082 = vunpack.c.h.b16 %v737
        %v1083 = vunpack.c.l.b16 %v738
        %v1084 = vunpack.c.h.b16 %v738
        %v1085 = vunpack.c.l.b16 %v739
        %v1086 = vunpack.c.h.b16 %v739
        %v1087 = vunpack.c.l.b16 %v740
        %v1088 = vunpack.c.h.b16 %v740
        %v1089 = vunpack.c.l.b16 %v741
        %v1090 = vunpack.c.h.b16 %v741
        %v1091 = vunpack.c.l.b16 %v742
        %v1092 = vunpack.c.h.b16 %v742
        %v1093 = vunpack.c.l.b16 %v743
        %v1094 = vunpack.c.h.b16 %v743
        %v1095 = vunpack.c.l.b16 %v744
        %v1096 = vunpack.c.h.b16 %v744
        %v1097 = vunpack.c.l.b16 %v745
        %v1098 = vunpack.c.h.b16 %v745
        %v1099 = vunpack.c.l.b16 %v746
        %v1100 = vunpack.c.h.b16 %v746
        %v1101 = vunpack.c.l.b16 %v747
        %v1102 = vunpack.c.h.b16 %v747
        %v1103 = vunpack.c.l.b16 %v748
        %v1104 = vunpack.c.h.b16 %v748
        %v1105 = vunpack.c.l.b16 %v749
        %v1106 = vunpack.c.h.b16 %v749
        %v1107 = vunpack.c.l.b16 %v750
        %v1108 = vunpack.c.h.b16 %v750
        %v1109 = vunpack.c.l.b16 %v751
        %v1110 = vunpack.c.h.b16 %v751
        %v1111 = vunpack.c.l.b16 %v752
        %v1112 = vunpack.c.h.b16 %v752
        %v1113 = vunpack.c.l.b16 %v753
        %v1114 = vunpack.c.h.b16 %v753
        %v1115 = vunpack.c.l.b16 %v754
        %v1116 = vunpack.c.h.b16 %v754
        %v1117 = vunpack.c.l.b16 %v755
        %v1118 = vunpack.c.h.b16 %v755
        %v1119 = vunpack.c.l.b16 %v756
        %v1120 = vunpack.c.h.b16 %v756
        %v1121 = vunpack.c.l.b16 %v757
        %v1122 = vunpack.c.h.b16 %v757
        %v1123 = vunpack.c.l.b16 %v758
        %v1124 = vunpack.c.h.b16 %v758
        %v1125 = vunpack.c.l.b16 %v759
        %v1126 = vunpack.c.h.b16 %v759
        %v1127 = vunpack.c.l.b16 %v760
        %v1128 = vunpack.c.h.b16 %v760
        %v1129 = vunpack.c.l.b16 %v761
        %v1130 = vunpack.c.h.b16 %v761
        %v1131 = vunpack.c.l.b16 %v762
        %v1132 = vunpack.c.h.b16 %v762
        %v1133 = vunpack.c.l.b16 %v763
        %v1134 = vunpack.c.h.b16 %v763
        %v1135 = vunpack.c.l.b16 %v764
        %v1136 = vunpack.c.h.b16 %v764
        %v1137 = vunpack.c.l.b16 %v765
        %v1138 = vunpack.c.h.b16 %v765
        %v1139 = vunpack.c.l.b16 %v766
        %v1140 = vunpack.c.h.b16 %v766
        %v1141 = vunpack.c.l.b16 %v767
        %v1142 = vunpack.c.h.b16 %v767
        %v1143 = vunpack.c.l.b16 %v768
        %v1144 = vunpack.c.h.b16 %v768
        %v1145 = vunpack.c.l.b16 %v769
        %v1146 = vunpack.c.h.b16 %v769
        %v1147 = vunpack.c.l.b16 %v770
        %v1148 = vunpack.c.h.b16 %v770
        %v1149 = vunpack.c.l.b16 %v771
        %v1150 = vunpack.c.h.b16 %v771
        %v1151 = vunpack.c.l.b16 %v772
        %v1152 = vunpack.c.h.b16 %v772
        %v1153 = vunpack.c.l.b16 %v773
        %v1154 = vunpack.c.h.b16 %v773
        %v1155 = vunpack.c.l.b16 %v774
        %v1156 = vunpack.c.h.b16 %v774
        %v1157 = vunpack.c.l.b16 %v775
        %v1158 = vunpack.c.h.b16 %v775
        %v1159 = vunpack.c.l.b16 %v776
        %v1160 = vunpack.c.h.b16 %v776
        %v1161 = vunpack.c.l.b16 %v777
        %v1162 = vunpack.c.h.b16 %v777
        %v1163 = vunpack.c.l.b16 %v778
        %v1164 = vunpack.c.h.b16 %v778
        %v1165 = vunpack.c.l.b16 %v779
        %v1166 = vunpack.c.h.b16 %v779
        %v1167 = vunpack.c.l.b16 %v780
        %v1168 = vunpack.c.h.b16 %v780
        %v1169 = vunpack.c.l.b16 %v781
        %v1170 = vunpack.c.h.b16 %v781
        %v1171 = vunpack.c.l.b16 %v782
        %v1172 = vunpack.c.h.b16 %v782
        %v1173 = vunpack.c.l.b16 %v783
        %v1174 = vunpack.c.h.b16 %v783
        %v1175 = vunpack.c.l.b16 %v784
        %v1176 = vunpack.c.h.b16 %v784
        %v1177 = vunpack.c.l.b16 %v785
        %v1178 = vunpack.c.h.b16 %v785
        %v1179 = vunpack.c.l.b16 %v786
        %v1180 = vunpack.c.h.b16 %v786
        %v1181 = vunpack.c.l.b16 %v787
        %v1182 = vunpack.c.h.b16 %v787
        %v1183 = vunpack.c.l.b16 %v788
        %v1184 = vunpack.c.h.b16 %v788
        %v1185 = vunpack.c.l.b16 %v789
        %v1186 = vunpack.c.h.b16 %v789
        %v1187 = vunpack.c.l.b16 %v790
        %v1188 = vunpack.c.h.b16 %v790
        %v1189 = vunpack.c.l.b16 %v791
        %v1190 = vunpack.c.h.b16 %v791
        %v1191 = vunpack.c.l.b16 %v792
        %v1192 = vunpack.c.h.b16 %v792
        %v1193 = vunpack.c.l.b16 %v793
        %v1194 = vunpack.c.h.b16 %v793
        %v1195 = vunpack.c.l.b16 %v794
        %v1196 = vunpack.c.h.b16 %v794
        %v1197 = vunpack.c.l.b16 %v795
        %v1198 = vunpack.c.h.b16 %v795
        %v1199 = vunpack.c.l.b16 %v796
        %v1200 = vunpack.c.h.b16 %v796
        %v1201 = vunpack.c.l.b16 %v797
        %v1202 = vunpack.c.h.b16 %v797
        %v1203 = vunpack.c.l.b16 %v798
        %v1204 = vunpack.c.h.b16 %v798
        %v1205 = vpack.c.b16 %v953, %v949
        %v1206 = vpack.c.b16 %v954, %v950
        %v1207 = vpack.c.b16 %v955, %v951
        %v1208 = vpack.c.b16 %v956, %v952
        %v1209 = vpack.c.b16 %v961, %v957
        %v1210 = vpack.c.b16 %v962, %v958
        %v1211 = vpack.c.b16 %v963, %v959
        %v1212 = vpack.c.b16 %v964, %v960
        %v1213 = vpack.c.b16 %v969, %v965
        %v1214 = vpack.c.b16 %v970, %v966
        %v1215 = vpack.c.b16 %v971, %v967
        %v1216 = vpack.c.b16 %v972, %v968
        %v1217 = vpack.c.b16 %v977, %v973
        %v1218 = vpack.c.b16 %v978, %v974
        %v1219 = vpack.c.b16 %v979, %v975
        %v1220 = vpack.c.b16 %v980, %v976
        %v1221 = vpack.c.b16 %v985, %v981
        %v1222 = vpack.c.b16 %v986, %v982
        %v1223 = vpack.c.b16 %v987, %v983
        %v1224 = vpack.c.b16 %v988, %v984
        %v1225 = vpack.c.b16 %v993, %v989
        %v1226 = vpack.c.b16 %v994, %v990
        %v1227 = vpack.c.b16 %v995, %v991
        %v1228 = vpack.c.b16 %v996, %v992
        %v1229 = vpack.c.b16 %v1001, %v997
        %v1230 = vpack.c.b16 %v1002, %v998
        %v1231 = vpack.c.b16 %v1003, %v999
        %v1232 = vpack.c.b16 %v1004, %v1000
        %v1233 = vpack.c.b16 %v1009, %v1005
        %v1234 = vpack.c.b16 %v1010, %v1006
        %v1235 = vpack.c.b16 %v1011, %v1007
        %v1236 = vpack.c.b16 %v1012, %v1008
        %v1237 = vpack.c.b16 %v1017, %v1013
        %v1238 = vpack.c.b16 %v1018, %v1014
        %v1239 = vpack.c.b16 %v1019, %v1015
        %v1240 = vpack.c.b16 %v1020, %v1016
        %v1241 = vpack.c.b16 %v1025, %v1021
        %v1242 = vpack.c.b16 %v1026, %v1022
        %v1243 = vpack.c.b16 %v1027, %v1023
        %v1244 = vpack.c.b16 %v1028, %v1024
        %v1245 = vpack.c.b16 %v1033, %v1029
        %v1246 = vpack.c.b16 %v1034, %v1030
        %v1247 = vpack.c.b16 %v1035, %v1031
        %v1248 = vpack.c.b16 %v1036, %v1032
        %v1249 = vpack.c.b16 %v1041, %v1037
        %v1250 = vpack.c.b16 %v1042, %v1038
        %v1251 = vpack.c.b16 %v1043, %v1039
        %v1252 = vpack.c.b16 %v1044, %v1040
        %v1253 = vpack.c.b16 %v1049, %v1045
        %v1254 = vpack.c.b16 %v1050, %v1046
        %v1255 = vpack.c.b16 %v1051, %v1047
        %v1256 = vpack.c.b16 %v1052, %v1048
        %v1257 = vpack.c.b16 %v1057, %v1053
        %v1258 = vpack.c.b16 %v1058, %v1054
        %v1259 = vpack.c.b16 %v1059, %v1055
        %v1260 = vpack.c.b16 %v1060, %v1056
        %v1261 = vpack.c.b16 %v1065, %v1061
        %v1262 = vpack.c.b16 %v1066, %v1062
        %v1263 = vpack.c.b16 %v1067, %v1063
        %v1264 = vpack.c.b16 %v1068, %v1064
        %v1265 = vpack.c.b16 %v1073, %v1069
        %v1266 = vpack.c.b16 %v1074, %v1070
        %v1267 = vpack.c.b16 %v1075, %v1071
        %v1268 = vpack.c.b16 %v1076, %v1072
        %v1269 = vpack.c.b16 %v1081, %v1077
        %v1270 = vpack.c.b16 %v1082, %v1078
        %v1271 = vpack.c.b16 %v1083, %v1079
        %v1272 = vpack.c.b16 %v1084, %v1080
        %v1273 = vpack.c.b16 %v1089, %v1085
        %v1274 = vpack.c.b16 %v1090, %v1086
        %v1275 = vpack.c.b16 %v1091, %v1087
        %v1276 = vpack.c.b16 %v1092, %v1088
        %v1277 = vpack.c.b16 %v1097, %v1093
        %v1278 = vpack.c.b16 %v1098, %v1094
        %v1279 = vpack.c.b16 %v1099, %v1095
        %v1280 = vpack.c.b16 %v1100, %v1096
        %v1281 = vpack.c.b16 %v1105, %v1101
        %v1282 = vpack.c.b16 %v1106, %v1102
        %v1283 = vpack.c.b16 %v1107, %v1103
        %v1284 = vpack.c.b16 %v1108, %v1104
        %v1285 = vpack.c.b16 %v1113, %v1109
        %v1286 = vpack.c.b16 %v1114, %v1110
        %v1287 = vpack.c.b16 %v1115, %v1111
        %v1288 = vpack.c.b16 %v1116, %v1112
        %v1289 = vpack.c.b16 %v1121, %v1117
        %v1290 = vpack.c.b16 %v1122, %v1118
        %v1291 = vpack.c.b16 %v1123, %v1119
        %v1292 = vpack.c.b16 %v1124, %v1120
        %v1293 = vpack.c.b16 %v1129, %v1125
        %v1294 = vpack.c.b16 %v1130, %v1126
        %v1295 = vpack.c.b16 %v1131, %v1127
        %v1296 = vpack.c.b16 %v1132, %v1128
        %v1297 = vpack.c.b16 %v1137, %v1133
        %v1298 = vpack.c.b16 %v1138, %v1134
        %v1299 = vpack.c.b16 %v1139, %v1135
        %v1300 = vpack.c.b16 %v1140, %v1136
        %v1301 = vpack.c.b16 %v1145, %v1141
        %v1302 = vpack.c.b16 %v1146, %v1142
        %v1303 = vpack.c.b16 %v1147, %v1143
        %v1304 = vpack.c.b16 %v1148, %v1144
        %v1305 = vpack.c.b16 %v1153, %v1149
        %v1306 = vpack.c.b16 %v1154, %v1150
        %v1307 = vpack.c.b16 %v1155, %v1151
        %v1308 = vpack.c.b16 %v1156, %v1152
        %v1309 = vpack.c.b16 %v1161, %v1157
        %v1310 = vpack.c.b16 %v1162, %v1158
        %v1311 = vpack.c.b16 %v1163, %v1159
        %v1312 = vpack.c.b16 %v1164, %v1160
        %v1313 = vpack.c.b16 %v1169, %v1165
        %v1314 = vpack.c.b16 %v1170, %v1166
        %v1315 = vpack.c.b16 %v1171, %v1167
        %v1316 = vpack.c.b16 %v1172, %v1168
        %v1317 = vpack.c.b16 %v1177, %v1173
        %v1318 = vpack.c.b16 %v1178, %v1174
        %v1319 = vpack.c.b16 %v1179, %v1175
        %v1320 = vpack.c.b16 %v1180, %v1176
        %v1321 = vpack.c.b16 %v1185, %v1181
        %v1322 = vpack.c.b16 %v1186, %v1182
        %v1323 = vpack.c.b16 %v1187, %v1183
        %v1324 = vpack.c.b16 %v1188, %v1184
        %v1325 = vpack.c.b16 %v1193, %v1189
        %v1326 = vpack.c.b16 %v1194, %v1190
        %v1327 = vpack.c.b16 %v1195, %v1191
        %v1328 = vpack.c.b16 %v1196, %v1192
        %v1329 = vpack.c.b16 %v1201, %v1197
        %v1330 = vpack.c.b16 %v1202, %v1198
        %v1331 = vpack.c.b16 %v1203, %v1199
        %v1332 = vpack.c.b16 %v1204, %v1200
        %1461 = vmatprep.subr.bf16.mxu0 %v1234
        %1462 = vmatpush1.bf16.msra.mxu0 %v1233
        %1463 = vmatprep.subr.bf16.mxu0 %v1230
        %1464 = vmatpush1.bf16.msra.mxu0 %v1229
        %1465 = vmatprep.subr.bf16.mxu0 %v1226
        %1466 = vmatpush1.bf16.msra.mxu0 %v1225
        %1467 = vmatprep.subr.bf16.mxu0 %v1222
        %1468 = vmatpush1.bf16.msra.mxu0 %v1221
        %1469 = vmatprep.subr.bf16.mxu0 %v1218
        %1470 = vmatpush1.bf16.msra.mxu0 %v1217
        %1471 = vmatprep.subr.bf16.mxu0 %v1214
        %1472 = vmatpush1.bf16.msra.mxu0 %v1213
        %1473 = vmatprep.subr.bf16.mxu0 %v1210
        %1474 = vmatpush1.bf16.msra.mxu0 %v1209
        %1475 = vmatprep.subr.bf16.mxu0 %v1206
        %1476 = vmatpush1.bf16.msra.mxu0 %v1205
        %1477 = vmatprep.subr.bf16.mxu0 %v1266
        %1478 = vmatpush2.bf16.msra.mxu0 %v1265
        %1479 = vmatprep.subr.bf16.mxu0 %v1262
        %1480 = vmatpush2.bf16.msra.mxu0 %v1261
        %1481 = vmatprep.subr.bf16.mxu0 %v1258
        %1482 = vmatpush2.bf16.msra.mxu0 %v1257
        %1483 = vmatprep.subr.bf16.mxu0 %v1254
        %1484 = vmatpush2.bf16.msra.mxu0 %v1253
        %1485 = vmatprep.subr.bf16.mxu0 %v1250
        %1486 = vmatpush2.bf16.msra.mxu0 %v1249
        %1487 = vmatprep.subr.bf16.mxu0 %v1246
        %1488 = vmatpush2.bf16.msra.mxu0 %v1245
        %1489 = vmatprep.subr.bf16.mxu0 %v1242
        %1490 = vmatpush2.bf16.msra.mxu0 %v1241
        %1491 = vmatprep.subr.bf16.mxu0 %v1238
        %1492 = vmatpush2.bf16.msra.mxu0 %v1237
        %1493 = vmatprep.mubr.bf16.mxu0 %v668
        %1494 = vmatmul.mubr.bf16.gmra.mxu0 %v667
        %v1495 = vpop.f32.mrf.mxu0
        %v1496 = vadd.f32 %v804, %v1495
        %v1497 = vpop.f32.mrf.mxu0
        %v1498 = vadd.f32 %v808, %v1497
        %v1499 = vpop.f32.mrf.mxu0
        %v1500 = vadd.f32 %v804, %v1499
        %v1501 = vpop.f32.mrf.mxu0
        %v1502 = vadd.f32 %v808, %v1501
        %1503 = vdwg.mxu0
        %1504 = vmatprep.subr.bf16.mxu0 %v1298
        %1505 = vmatpush1.bf16.msra.mxu0 %v1297
        %1506 = vmatprep.subr.bf16.mxu0 %v1294
        %1507 = vmatpush1.bf16.msra.mxu0 %v1293
        %1508 = vmatprep.subr.bf16.mxu0 %v1290
        %1509 = vmatpush1.bf16.msra.mxu0 %v1289
        %1510 = vmatprep.subr.bf16.mxu0 %v1286
        %1511 = vmatpush1.bf16.msra.mxu0 %v1285
        %1512 = vmatprep.subr.bf16.mxu0 %v1282
        %1513 = vmatpush1.bf16.msra.mxu0 %v1281
        %1514 = vmatprep.subr.bf16.mxu0 %v1278
        %1515 = vmatpush1.bf16.msra.mxu0 %v1277
        %1516 = vmatprep.subr.bf16.mxu0 %v1274
        %1517 = vmatpush1.bf16.msra.mxu0 %v1273
        %1518 = vmatprep.subr.bf16.mxu0 %v1270
        %1519 = vmatpush1.bf16.msra.mxu0 %v1269
        %1520 = vmatprep.subr.bf16.mxu0 %v1330
        %1521 = vmatpush2.bf16.msra.mxu0 %v1329
        %1522 = vmatprep.subr.bf16.mxu0 %v1326
        %1523 = vmatpush2.bf16.msra.mxu0 %v1325
        %1524 = vmatprep.subr.bf16.mxu0 %v1322
        %1525 = vmatpush2.bf16.msra.mxu0 %v1321
        %1526 = vmatprep.subr.bf16.mxu0 %v1318
        %1527 = vmatpush2.bf16.msra.mxu0 %v1317
        %1528 = vmatprep.subr.bf16.mxu0 %v1314
        %1529 = vmatpush2.bf16.msra.mxu0 %v1313
        %1530 = vmatprep.subr.bf16.mxu0 %v1310
        %1531 = vmatpush2.bf16.msra.mxu0 %v1309
        %1532 = vmatprep.subr.bf16.mxu0 %v1306
        %1533 = vmatpush2.bf16.msra.mxu0 %v1305
        %1534 = vmatprep.subr.bf16.mxu0 %v1302
        %1535 = vmatpush2.bf16.msra.mxu0 %v1301
        %1536 = vmatprep.mubr.bf16.mxu0 %v670
        %1537 = vmatmul.mubr.bf16.gmra.mxu0 %v669
        %v1538 = vpop.f32.mrf.mxu0
        %v1539 = vadd.f32 %v1496, %v1538
        %v1540 = vpop.f32.mrf.mxu0
        %v1541 = vadd.f32 %v1498, %v1540
        %v1542 = vpop.f32.mrf.mxu0
        %v1543 = vadd.f32 %v1500, %v1542
        %v1544 = vpop.f32.mrf.mxu0
        %v1545 = vadd.f32 %v1502, %v1544
        %1546 = vdwg.mxu0
        %1547 = vmatprep.subr.bf16.mxu0 %v1236
        %1548 = vmatpush1.bf16.msra.mxu0 %v1235
        %1549 = vmatprep.subr.bf16.mxu0 %v1232
        %1550 = vmatpush1.bf16.msra.mxu0 %v1231
        %1551 = vmatprep.subr.bf16.mxu0 %v1228
        %1552 = vmatpush1.bf16.msra.mxu0 %v1227
        %1553 = vmatprep.subr.bf16.mxu0 %v1224
        %1554 = vmatpush1.bf16.msra.mxu0 %v1223
        %1555 = vmatprep.subr.bf16.mxu0 %v1220
        %1556 = vmatpush1.bf16.msra.mxu0 %v1219
        %1557 = vmatprep.subr.bf16.mxu0 %v1216
        %1558 = vmatpush1.bf16.msra.mxu0 %v1215
        %1559 = vmatprep.subr.bf16.mxu0 %v1212
        %1560 = vmatpush1.bf16.msra.mxu0 %v1211
        %1561 = vmatprep.subr.bf16.mxu0 %v1208
        %1562 = vmatpush1.bf16.msra.mxu0 %v1207
        %1563 = vmatprep.subr.bf16.mxu0 %v1268
        %1564 = vmatpush2.bf16.msra.mxu0 %v1267
        %1565 = vmatprep.subr.bf16.mxu0 %v1264
        %1566 = vmatpush2.bf16.msra.mxu0 %v1263
        %1567 = vmatprep.subr.bf16.mxu0 %v1260
        %1568 = vmatpush2.bf16.msra.mxu0 %v1259
        %1569 = vmatprep.subr.bf16.mxu0 %v1256
        %1570 = vmatpush2.bf16.msra.mxu0 %v1255
        %1571 = vmatprep.subr.bf16.mxu0 %v1252
        %1572 = vmatpush2.bf16.msra.mxu0 %v1251
        %1573 = vmatprep.subr.bf16.mxu0 %v1248
        %1574 = vmatpush2.bf16.msra.mxu0 %v1247
        %1575 = vmatprep.subr.bf16.mxu0 %v1244
        %1576 = vmatpush2.bf16.msra.mxu0 %v1243
        %1577 = vmatprep.subr.bf16.mxu0 %v1240
        %1578 = vmatpush2.bf16.msra.mxu0 %v1239
        %1579 = vmatprep.mubr.bf16.mxu0 %v668
        %1580 = vmatmul.mubr.bf16.gmra.mxu0 %v667
        %v1581 = vpop.f32.mrf.mxu0
        %v1582 = vadd.f32 %v812, %v1581
        %v1583 = vpop.f32.mrf.mxu0
        %v1584 = vadd.f32 %v816, %v1583
        %v1585 = vpop.f32.mrf.mxu0
        %v1586 = vadd.f32 %v812, %v1585
        %v1587 = vpop.f32.mrf.mxu0
        %v1588 = vadd.f32 %v816, %v1587
        %1589 = vdwg.mxu0
        %1590 = vmatprep.subr.bf16.mxu0 %v1300
        %1591 = vmatpush1.bf16.msra.mxu0 %v1299
        %1592 = vmatprep.subr.bf16.mxu0 %v1296
        %1593 = vmatpush1.bf16.msra.mxu0 %v1295
        %1594 = vmatprep.subr.bf16.mxu0 %v1292
        %1595 = vmatpush1.bf16.msra.mxu0 %v1291
        %1596 = vmatprep.subr.bf16.mxu0 %v1288
        %1597 = vmatpush1.bf16.msra.mxu0 %v1287
        %1598 = vmatprep.subr.bf16.mxu0 %v1284
        %1599 = vmatpush1.bf16.msra.mxu0 %v1283
        %1600 = vmatprep.subr.bf16.mxu0 %v1280
        %1601 = vmatpush1.bf16.msra.mxu0 %v1279
        %1602 = vmatprep.subr.bf16.mxu0 %v1276
        %1603 = vmatpush1.bf16.msra.mxu0 %v1275
        %1604 = vmatprep.subr.bf16.mxu0 %v1272
        %1605 = vmatpush1.bf16.msra.mxu0 %v1271
        %1606 = vmatprep.subr.bf16.mxu0 %v1332
        %1607 = vmatpush2.bf16.msra.mxu0 %v1331
        %1608 = vmatprep.subr.bf16.mxu0 %v1328
        %1609 = vmatpush2.bf16.msra.mxu0 %v1327
        %1610 = vmatprep.subr.bf16.mxu0 %v1324
        %1611 = vmatpush2.bf16.msra.mxu0 %v1323
        %1612 = vmatprep.subr.bf16.mxu0 %v1320
        %1613 = vmatpush2.bf16.msra.mxu0 %v1319
        %1614 = vmatprep.subr.bf16.mxu0 %v1316
        %1615 = vmatpush2.bf16.msra.mxu0 %v1315
        %1616 = vmatprep.subr.bf16.mxu0 %v1312
        %1617 = vmatpush2.bf16.msra.mxu0 %v1311
        %1618 = vmatprep.subr.bf16.mxu0 %v1308
        %1619 = vmatpush2.bf16.msra.mxu0 %v1307
        %1620 = vmatprep.subr.bf16.mxu0 %v1304
        %1621 = vmatpush2.bf16.msra.mxu0 %v1303
        %1622 = vmatprep.mubr.bf16.mxu0 %v670
        %1623 = vmatmul.mubr.bf16.gmra.mxu0 %v669
        %v1624 = vpop.f32.mrf.mxu0
        %v1625 = vadd.f32 %v1582, %v1624
        %v1626 = vpop.f32.mrf.mxu0
        %v1627 = vadd.f32 %v1584, %v1626
        %v1628 = vpop.f32.mrf.mxu0
        %v1629 = vadd.f32 %v1586, %v1628
        %v1630 = vpop.f32.mrf.mxu0
        %v1631 = vadd.f32 %v1588, %v1630
        %1632 = vdwg.mxu0
        %v1633 = vmax.f32 %v1539, 0.0
        %v1634 = vmax.f32 %v1541, 0.0
        %v1635 = vmax.f32 %v1625, 0.0
        %v1636 = vmax.f32 %v1627, 0.0
        %v1637 = vmax.f32 %v1543, 0.0
        %v1638 = vmax.f32 %v1545, 0.0
        %v1639 = vmax.f32 %v1629, 0.0
        %v1640 = vmax.f32 %v1631, 0.0
        %v1641 = vpack.c.bf16 %v1637, %v1633
        %v1642 = vpack.c.bf16 %v1638, %v1634
        %v1643 = vpack.c.bf16 %v1639, %v1635
        %v1644 = vpack.c.bf16 %v1640, %v1636
        %v1645 = vld [vmem:[#allocation10] sm:$0xf]
        %v1646 = vld [vmem:[#allocation10 + $0x4] sm:$0xf]
        %v1647 = vld [vmem:[#allocation10 + $0x8] sm:$0xf]
        %v1648 = vld [vmem:[#allocation10 + $0xc] sm:$0xf]
        %v1649 = vld [vmem:[#allocation10 + $0x10] sm:$0xf]
        %v1650 = vld [vmem:[#allocation10 + $0x14] sm:$0xf]
        %v1651 = vld [vmem:[#allocation10 + $0x18] sm:$0xf]
        %v1652 = vld [vmem:[#allocation10 + $0x1c] sm:$0xf]
        %v1653 = vld [vmem:[#allocation10 + $0x20] sm:$0xf]
        %v1654 = vld [vmem:[#allocation10 + $0x24] sm:$0xf]
        %v1655 = vld [vmem:[#allocation10 + $0x28] sm:$0xf]
        %v1656 = vld [vmem:[#allocation10 + $0x2c] sm:$0xf]
        %v1657 = vld [vmem:[#allocation10 + $0x30] sm:$0xf]
        %v1658 = vld [vmem:[#allocation10 + $0x34] sm:$0xf]
        %v1659 = vld [vmem:[#allocation10 + $0x38] sm:$0xf]
        %v1660 = vld [vmem:[#allocation10 + $0x3c] sm:$0xf]
        %v1661 = vld [vmem:[#allocation10 + $0x40] sm:$0xf]
        %v1662 = vld [vmem:[#allocation10 + $0x44] sm:$0xf]
        %v1663 = vld [vmem:[#allocation10 + $0x48] sm:$0xf]
        %v1664 = vld [vmem:[#allocation10 + $0x4c] sm:$0xf]
        %v1665 = vld [vmem:[#allocation10 + $0x50] sm:$0xf]
        %v1666 = vld [vmem:[#allocation10 + $0x54] sm:$0xf]
        %v1667 = vld [vmem:[#allocation10 + $0x58] sm:$0xf]
        %v1668 = vld [vmem:[#allocation10 + $0x5c] sm:$0xf]
        %v1669 = vld [vmem:[#allocation10 + $0x60] sm:$0xf]
        %v1670 = vld [vmem:[#allocation10 + $0x64] sm:$0xf]
        %v1671 = vld [vmem:[#allocation10 + $0x68] sm:$0xf]
        %v1672 = vld [vmem:[#allocation10 + $0x6c] sm:$0xf]
        %v1673 = vld [vmem:[#allocation10 + $0x70] sm:$0xf]
        %v1674 = vld [vmem:[#allocation10 + $0x74] sm:$0xf]
        %v1675 = vld [vmem:[#allocation10 + $0x78] sm:$0xf]
        %v1676 = vld [vmem:[#allocation10 + $0x7c] sm:$0xf]
        %v1677 = vld [vmem:[#allocation10 + $0x80] sm:$0xf]
        %v1678 = vld [vmem:[#allocation10 + $0x84] sm:$0xf]
        %v1679 = vld [vmem:[#allocation10 + $0x88] sm:$0xf]
        %v1680 = vld [vmem:[#allocation10 + $0x8c] sm:$0xf]
        %v1681 = vld [vmem:[#allocation10 + $0x90] sm:$0xf]
        %v1682 = vld [vmem:[#allocation10 + $0x94] sm:$0xf]
        %v1683 = vld [vmem:[#allocation10 + $0x98] sm:$0xf]
        %v1684 = vld [vmem:[#allocation10 + $0x9c] sm:$0xf]
        %v1685 = vld [vmem:[#allocation10 + $0xa0] sm:$0xf]
        %v1686 = vld [vmem:[#allocation10 + $0xa4] sm:$0xf]
        %v1687 = vld [vmem:[#allocation10 + $0xa8] sm:$0xf]
        %v1688 = vld [vmem:[#allocation10 + $0xac] sm:$0xf]
        %v1689 = vld [vmem:[#allocation10 + $0xb0] sm:$0xf]
        %v1690 = vld [vmem:[#allocation10 + $0xb4] sm:$0xf]
        %v1691 = vld [vmem:[#allocation10 + $0xb8] sm:$0xf]
        %v1692 = vld [vmem:[#allocation10 + $0xbc] sm:$0xf]
        %v1693 = vld [vmem:[#allocation10 + $0xc0] sm:$0xf]
        %v1694 = vld [vmem:[#allocation10 + $0xc4] sm:$0xf]
        %v1695 = vld [vmem:[#allocation10 + $0xc8] sm:$0xf]
        %v1696 = vld [vmem:[#allocation10 + $0xcc] sm:$0xf]
        %v1697 = vld [vmem:[#allocation10 + $0xd0] sm:$0xf]
        %v1698 = vld [vmem:[#allocation10 + $0xd4] sm:$0xf]
        %v1699 = vld [vmem:[#allocation10 + $0xd8] sm:$0xf]
        %v1700 = vld [vmem:[#allocation10 + $0xdc] sm:$0xf]
        %v1701 = vld [vmem:[#allocation10 + $0xe0] sm:$0xf]
        %v1702 = vld [vmem:[#allocation10 + $0xe4] sm:$0xf]
        %v1703 = vld [vmem:[#allocation10 + $0xe8] sm:$0xf]
        %v1704 = vld [vmem:[#allocation10 + $0xec] sm:$0xf]
        %v1705 = vld [vmem:[#allocation10 + $0xf0] sm:$0xf]
        %v1706 = vld [vmem:[#allocation10 + $0xf4] sm:$0xf]
        %v1707 = vld [vmem:[#allocation10 + $0xf8] sm:$0xf]
        %v1708 = vld [vmem:[#allocation10 + $0xfc] sm:$0xf]
        %v1709 = vld [vmem:[%s6] sm:$0x1]
        %v1711 = vlaneseq
        %v1712 = vshrl.u32 %v1711, 7
        %v1713 = vsub.s32 0, %v1712
        %v1714 = vrot.slane %v1709, %v1713
        %v1780 = vunpack.c.l.b16 %v1645
        %v1781 = vunpack.c.l.b16 %v1646
        %v1782 = vunpack.c.l.b16 %v1647
        %v1783 = vunpack.c.l.b16 %v1648
        %v1784 = vunpack.c.l.b16 %v1649
        %v1785 = vunpack.c.l.b16 %v1650
        %v1786 = vunpack.c.l.b16 %v1651
        %v1787 = vunpack.c.l.b16 %v1652
        %v1788 = vunpack.c.l.b16 %v1653
        %v1789 = vunpack.c.l.b16 %v1654
        %v1790 = vunpack.c.l.b16 %v1655
        %v1791 = vunpack.c.l.b16 %v1656
        %v1792 = vunpack.c.l.b16 %v1657
        %v1793 = vunpack.c.l.b16 %v1658
        %v1794 = vunpack.c.l.b16 %v1659
        %v1795 = vunpack.c.l.b16 %v1660
        %v1796 = vunpack.c.l.b16 %v1661
        %v1797 = vunpack.c.l.b16 %v1662
        %v1798 = vunpack.c.l.b16 %v1663
        %v1799 = vunpack.c.l.b16 %v1664
        %v1800 = vunpack.c.l.b16 %v1665
        %v1801 = vunpack.c.l.b16 %v1666
        %v1802 = vunpack.c.l.b16 %v1667
        %v1803 = vunpack.c.l.b16 %v1668
        %v1804 = vunpack.c.l.b16 %v1669
        %v1805 = vunpack.c.l.b16 %v1670
        %v1806 = vunpack.c.l.b16 %v1671
        %v1807 = vunpack.c.l.b16 %v1672
        %v1808 = vunpack.c.l.b16 %v1673
        %v1809 = vunpack.c.l.b16 %v1674
        %v1810 = vunpack.c.l.b16 %v1675
        %v1811 = vunpack.c.l.b16 %v1676
        %v1812 = vunpack.c.l.b16 %v1677
        %v1813 = vunpack.c.l.b16 %v1678
        %v1814 = vunpack.c.l.b16 %v1679
        %v1815 = vunpack.c.l.b16 %v1680
        %v1816 = vunpack.c.l.b16 %v1681
        %v1817 = vunpack.c.l.b16 %v1682
        %v1818 = vunpack.c.l.b16 %v1683
        %v1819 = vunpack.c.l.b16 %v1684
        %v1820 = vunpack.c.l.b16 %v1685
        %v1821 = vunpack.c.l.b16 %v1686
        %v1822 = vunpack.c.l.b16 %v1687
        %v1823 = vunpack.c.l.b16 %v1688
        %v1824 = vunpack.c.l.b16 %v1689
        %v1825 = vunpack.c.l.b16 %v1690
        %v1826 = vunpack.c.l.b16 %v1691
        %v1827 = vunpack.c.l.b16 %v1692
        %v1828 = vunpack.c.l.b16 %v1693
        %v1829 = vunpack.c.l.b16 %v1694
        %v1830 = vunpack.c.l.b16 %v1695
        %v1831 = vunpack.c.l.b16 %v1696
        %v1832 = vunpack.c.l.b16 %v1697
        %v1833 = vunpack.c.l.b16 %v1698
        %v1834 = vunpack.c.l.b16 %v1699
        %v1835 = vunpack.c.l.b16 %v1700
        %v1836 = vunpack.c.l.b16 %v1701
        %v1837 = vunpack.c.l.b16 %v1702
        %v1838 = vunpack.c.l.b16 %v1703
        %v1839 = vunpack.c.l.b16 %v1704
        %v1840 = vunpack.c.l.b16 %v1705
        %v1841 = vunpack.c.l.b16 %v1706
        %v1842 = vunpack.c.l.b16 %v1707
        %v1843 = vunpack.c.l.b16 %v1708
        %v1844 = vpack.c.b16 %v1781, %v1780
        %v1845 = vpack.c.b16 %v1783, %v1782
        %v1846 = vpack.c.b16 %v1785, %v1784
        %v1847 = vpack.c.b16 %v1787, %v1786
        %v1848 = vpack.c.b16 %v1789, %v1788
        %v1849 = vpack.c.b16 %v1791, %v1790
        %v1850 = vpack.c.b16 %v1793, %v1792
        %v1851 = vpack.c.b16 %v1795, %v1794
        %v1852 = vpack.c.b16 %v1797, %v1796
        %v1853 = vpack.c.b16 %v1799, %v1798
        %v1854 = vpack.c.b16 %v1801, %v1800
        %v1855 = vpack.c.b16 %v1803, %v1802
        %v1856 = vpack.c.b16 %v1805, %v1804
        %v1857 = vpack.c.b16 %v1807, %v1806
        %v1858 = vpack.c.b16 %v1809, %v1808
        %v1859 = vpack.c.b16 %v1811, %v1810
        %v1860 = vpack.c.b16 %v1813, %v1812
        %v1861 = vpack.c.b16 %v1815, %v1814
        %v1862 = vpack.c.b16 %v1817, %v1816
        %v1863 = vpack.c.b16 %v1819, %v1818
        %v1864 = vpack.c.b16 %v1821, %v1820
        %v1865 = vpack.c.b16 %v1823, %v1822
        %v1866 = vpack.c.b16 %v1825, %v1824
        %v1867 = vpack.c.b16 %v1827, %v1826
        %v1868 = vpack.c.b16 %v1829, %v1828
        %v1869 = vpack.c.b16 %v1831, %v1830
        %v1870 = vpack.c.b16 %v1833, %v1832
        %v1871 = vpack.c.b16 %v1835, %v1834
        %v1872 = vpack.c.b16 %v1837, %v1836
        %v1873 = vpack.c.b16 %v1839, %v1838
        %v1874 = vpack.c.b16 %v1841, %v1840
        %v1875 = vpack.c.b16 %v1843, %v1842
        %1908 = vmatprep.subr.bf16.mxu0 0
        %1909 = vmatpush1.bf16.msra.mxu0 %v1851
        %1910 = vmatprep.subr.bf16.mxu0 0
        %1911 = vmatpush1.bf16.msra.mxu0 %v1850
        %1912 = vmatprep.subr.bf16.mxu0 0
        %1913 = vmatpush1.bf16.msra.mxu0 %v1849
        %1914 = vmatprep.subr.bf16.mxu0 0
        %1915 = vmatpush1.bf16.msra.mxu0 %v1848
        %1916 = vmatprep.subr.bf16.mxu0 0
        %1917 = vmatpush1.bf16.msra.mxu0 %v1847
        %1918 = vmatprep.subr.bf16.mxu0 0
        %1919 = vmatpush1.bf16.msra.mxu0 %v1846
        %1920 = vmatprep.subr.bf16.mxu0 0
        %1921 = vmatpush1.bf16.msra.mxu0 %v1845
        %1922 = vmatprep.subr.bf16.mxu0 0
        %1923 = vmatpush1.bf16.msra.mxu0 %v1844
        %1924 = vmatprep.subr.bf16.mxu0 0
        %1925 = vmatpush2.bf16.msra.mxu0 %v1859
        %1926 = vmatprep.subr.bf16.mxu0 0
        %1927 = vmatpush2.bf16.msra.mxu0 %v1858
        %1928 = vmatprep.subr.bf16.mxu0 0
        %1929 = vmatpush2.bf16.msra.mxu0 %v1857
        %1930 = vmatprep.subr.bf16.mxu0 0
        %1931 = vmatpush2.bf16.msra.mxu0 %v1856
        %1932 = vmatprep.subr.bf16.mxu0 0
        %1933 = vmatpush2.bf16.msra.mxu0 %v1855
        %1934 = vmatprep.subr.bf16.mxu0 0
        %1935 = vmatpush2.bf16.msra.mxu0 %v1854
        %1936 = vmatprep.subr.bf16.mxu0 0
        %1937 = vmatpush2.bf16.msra.mxu0 %v1853
        %1938 = vmatprep.subr.bf16.mxu0 0
        %1939 = vmatpush2.bf16.msra.mxu0 %v1852
        %1940 = vmatprep.mubr.bf16.mxu0 %v1642
        %1941 = vmatmul.mubr.bf16.gmra.mxu0 %v1641
        %v1942 = vpop.f32.mrf.mxu0
        %v1943 = vadd.f32 %v1714, %v1942
        %v1944 = vpop.f32.mrf.mxu0
        %v1945 = vpop.f32.mrf.mxu0
        %v1946 = vadd.f32 %v1714, %v1945
        %v1947 = vpop.f32.mrf.mxu0
        %1948 = vdwg.mxu0
        %1949 = vmatprep.subr.bf16.mxu0 0
        %1950 = vmatpush1.bf16.msra.mxu0 %v1867
        %1951 = vmatprep.subr.bf16.mxu0 0
        %1952 = vmatpush1.bf16.msra.mxu0 %v1866
        %1953 = vmatprep.subr.bf16.mxu0 0
        %1954 = vmatpush1.bf16.msra.mxu0 %v1865
        %1955 = vmatprep.subr.bf16.mxu0 0
        %1956 = vmatpush1.bf16.msra.mxu0 %v1864
        %1957 = vmatprep.subr.bf16.mxu0 0
        %1958 = vmatpush1.bf16.msra.mxu0 %v1863
        %1959 = vmatprep.subr.bf16.mxu0 0
        %1960 = vmatpush1.bf16.msra.mxu0 %v1862
        %1961 = vmatprep.subr.bf16.mxu0 0
        %1962 = vmatpush1.bf16.msra.mxu0 %v1861
        %1963 = vmatprep.subr.bf16.mxu0 0
        %1964 = vmatpush1.bf16.msra.mxu0 %v1860
        %1965 = vmatprep.subr.bf16.mxu0 0
        %1966 = vmatpush2.bf16.msra.mxu0 %v1875
        %1967 = vmatprep.subr.bf16.mxu0 0
        %1968 = vmatpush2.bf16.msra.mxu0 %v1874
        %1969 = vmatprep.subr.bf16.mxu0 0
        %1970 = vmatpush2.bf16.msra.mxu0 %v1873
        %1971 = vmatprep.subr.bf16.mxu0 0
        %1972 = vmatpush2.bf16.msra.mxu0 %v1872
        %1973 = vmatprep.subr.bf16.mxu0 0
        %1974 = vmatpush2.bf16.msra.mxu0 %v1871
        %1975 = vmatprep.subr.bf16.mxu0 0
        %1976 = vmatpush2.bf16.msra.mxu0 %v1870
        %1977 = vmatprep.subr.bf16.mxu0 0
        %1978 = vmatpush2.bf16.msra.mxu0 %v1869
        %1979 = vmatprep.subr.bf16.mxu0 0
        %1980 = vmatpush2.bf16.msra.mxu0 %v1868
        %1981 = vmatprep.mubr.bf16.mxu0 %v1644
        %1982 = vmatmul.mubr.bf16.gmra.mxu0 %v1643
        %v1983 = vpop.f32.mrf.mxu0
        %v1984 = vadd.f32 %v1943, %v1983
        %v1985 = vpop.f32.mrf.mxu0
        %v1986 = vpop.f32.mrf.mxu0
        %v1987 = vadd.f32 %v1946, %v1986
        %v1988 = vpop.f32.mrf.mxu0
        %1989 = vdwg.mxu0
        %v1990 = vlaneseq
        %v1991 = vand.u32 %v1990, 127
        %v1992 = vtanh.pop %v1984
        %v1993 = vtanh.pop %v1987
        %v1994 = vadd.f32 %v1992, 1.0
        %v1995 = vadd.f32 %v1993, 1.0
        %v1996 = vmul.f32 %v1994, 3.5
        %v1997 = vmul.f32 %v1995, 3.5
        %v1998 = vadd.f32 %v1996, -5.0
        %v1999 = vadd.f32 %v1997, -5.0
        %vm2000 = vcmp.ge.s32.totalorder %v1991, 64
        %v2001 = vsel %vm2000, %v1998, %v1984
        %v2002 = vsel %vm2000, %v1999, %v1987
        %2003 = vst [vmem:[%s352] sm:$0xff] %v2001
        %2004 = vst [vmem:[%s352 + $0x8] sm:$0xff] %v2002
        %s2005 = sand.u32 %s186, 1
        %s2006 = scalar_lea.sflag [#allocation4], %s2005
        %s2007 = sand.u32 %s186, 1
        %s2008 = smul.addr %s2007, 16
        %s2009 = scalar_lea.vmem [#allocation11], %s2008
        // Predicated region
        $region69: #{tpu_custom_call.1} parent=47 // pred_check
          %p2010 = pneg %p196
        $region70: #{tpu_custom_call.1} parent=47 // pred_check_branch
          %2012 = sbr.rel (%p2010) target = $region72
        $region71: #{tpu_custom_call.1} parent=47 // pred_region
          %s2013 = smul.u32 2, %s26
          %s2015 = ssub.s32 256, 256
          %2016 = vsyncadd %s2006, %s2015
          %s2017 = smul.addr %s2013, 128
          %s2018 = scalar_lea.hbm %s7, %s2017
          %s2019 = sshll.u32 %s2009, 4
          %s2020 = int_to_ptr.vmem [resolvable:$true] %s2019
          %2025 = dma.vmem_to_hbm [thread:$0]  %s2020, 256, %s2018, %s2006, 128, 128, 8
        $region72: #{tpu_custom_call.1} parent=47 // pred_fallthru
          _
      $region48: #{tpu_custom_call.1} parent=5 // pred_fallthru
        _
      %p2026 = scmp.le.s32.totalorder 2, %s21
      // Predicated region
      $region73: #{tpu_custom_call.1} parent=5 // pred_check
        %p2027 = pneg %p2026
      $region74: #{tpu_custom_call.1} parent=5 // pred_check_branch
        %2029 = sbr.rel (%p2027) target = $region76
      $region75: #{tpu_custom_call.1} parent=5 // pred_region
        %s2030 = ssub.s32 %s21, 2
        // Predicated region
        $region77: #{tpu_custom_call.1} parent=75 // pred_check
          %p2031 = pneg %p202
        $region78: #{tpu_custom_call.1} parent=75 // pred_check_branch
          %2033 = sbr.rel (%p2031) target = $region80
        $region79: #{tpu_custom_call.1} parent=75 // pred_region
          %s2034 = sand.u32 %s187, 1
          %s2035 = scalar_lea.sflag [#allocation4], %s2034
          %s2036 = sand.u32 %s187, 1
          %s2037 = smul.addr %s2036, 16
          %s2038 = scalar_lea.vmem [#allocation11], %s2037
          %2039 = dma.done %s2035, 256
        $region80: #{tpu_custom_call.1} parent=75 // pred_fallthru
          _
      $region76: #{tpu_custom_call.1} parent=5 // pred_fallthru
        _
    $region6: #{tpu_custom_call.1} parent=1 // loop_footer
      %s25 = sadd.s32 1, %s21
    $region7: #{tpu_custom_call.1} parent=1 // loop_footer_branch
      %20 = sbr.rel target = $region3
    $region8: #{tpu_custom_call.1} parent=1 // loop_exit
      _
    %2040 = vsyncpa [#allocation3], 1
    %s2041 = scalar_lea.sflag [#allocation3], 1
    %2042 = vsyncpa %s2041, 1
    %2043 = vsyncpa [#allocation6], 1
    %2044 = vsyncpa [#allocation9], 1
    %2045 = vsyncpa [#allocation4], 1
    %s2046 = scalar_lea.sflag [#allocation4], 1
    %2047 = vsyncpa %s2046, 1

</llo_original>
